<compile_context>
chip_gen: v5e
topology: v5e:2x2
jax: 0.10.0
libtpu: 0.0.40
codegen_flags: <defaults>
</compile_context>

<pallas_src>
import functools

import jax
import jax.numpy as jnp
from jax.experimental import pallas as pl
from jax.experimental.pallas import tpu as pltpu

NEG_SLOPE = 0.3
D_IN, D_H1, D_H2, D_OUT = 100, 256, 512, 784

MAX_TILE_B = 1024                    # rows per grid step (sweepable 512-1024)
VMEM_LIMIT_BYTES = 48 * 1024 * 1024  # explicit scoped-VMEM limit (< v7x 64 MiB)


def _round_up(n, m):
    return (n + m - 1) // m * m


def _leaky_relu(x, slope):
    return jnp.where(x >= 0, x, slope * x)


def generator_kernel(x_ref,
                     w1_ref, b1_ref,
                     w2_ref, b2_ref,
                     w3_ref, b3_ref,
                     o_ref):
    # x tile: [tile_b, 100] f32 -> bf16 operand for the MXU.
    x = x_ref[...].astype(jnp.bfloat16)

    h1 = jnp.dot(x, w1_ref[...], preferred_element_type=jnp.float32)        # [tb, 256]
    h1 = _leaky_relu(h1 + b1_ref[...], NEG_SLOPE)

    h2 = jnp.dot(h1.astype(jnp.bfloat16), w2_ref[...],
                 preferred_element_type=jnp.float32)                        # [tb, 512]
    h2 = _leaky_relu(h2 + b2_ref[...], NEG_SLOPE)

    h3 = jnp.dot(h2.astype(jnp.bfloat16), w3_ref[...],
                 preferred_element_type=jnp.float32)                        # [tb, 784]
    h3 = _leaky_relu(h3 + b3_ref[...], NEG_SLOPE)

    o_ref[...] = jnp.tanh(h3).astype(o_ref.dtype)


def init_params(key):
    """Deterministic synthetic f32 parameters with nn.Linear shapes (stored transposed)."""
    dims = [(D_IN, D_H1), (D_H1, D_H2), (D_H2, D_OUT)]
    params = []
    for i, (din, dout) in enumerate(dims):
        kw, kb = jax.random.split(jax.random.fold_in(key, i))
        bound = 1.0 / (din ** 0.5)  # same scale as torch default init
        w = jax.random.uniform(kw, (din, dout), jnp.float32, -bound, bound)
        b = jax.random.uniform(kb, (1, dout), jnp.float32, -bound, bound)
        params.extend([w, b])
    return tuple(params)


def prepare_params(params):
    """One-time conversion: weights -> bf16 (half HBM weight traffic); biases stay f32."""
    w1, b1, w2, b2, w3, b3 = params
    return (w1.astype(jnp.bfloat16), b1,
            w2.astype(jnp.bfloat16), b2,
            w3.astype(jnp.bfloat16), b3)


def _choose_tile_b(batch):
    """Fewest grid steps s.t. tile <= MAX_TILE_B; >=2 steps for batch >= 128 (v7x 2 TCs)."""
    steps = pl.cdiv(batch, MAX_TILE_B)
    if batch >= 128:
        steps = max(steps, 2)
    tile_b = _round_up(pl.cdiv(batch, steps), 8)
    return batch if tile_b >= batch else tile_b


@functools.partial(jax.jit, static_argnames=("tile_b", "out_dtype"))
def _generator_call(x, prepped, tile_b, out_dtype):
    w1, b1, w2, b2, w3, b3 = prepped
    batch = x.shape[0]
    grid = (pl.cdiv(batch, tile_b),)   # partial last tile handled by Pallas masking

    # x / out tiled over batch; weight/bias blocks keep index (0, 0) -> VMEM-resident,
    # DMA'd once and reused across all grid steps.
    in_specs = [
        pl.BlockSpec((tile_b, D_IN), lambda i: (i, 0)),
        pl.BlockSpec((D_IN, D_H1), lambda i: (0, 0)),
        pl.BlockSpec((1, D_H1), lambda i: (0, 0)),
        pl.BlockSpec((D_H1, D_H2), lambda i: (0, 0)),
        pl.BlockSpec((1, D_H2), lambda i: (0, 0)),
        pl.BlockSpec((D_H2, D_OUT), lambda i: (0, 0)),
        pl.BlockSpec((1, D_OUT), lambda i: (0, 0)),
    ]
    out_spec = pl.BlockSpec((tile_b, D_OUT), lambda i: (i, 0))

    flops = 2 * batch * (D_IN * D_H1 + D_H1 * D_H2 + D_H2 * D_OUT)
    bytes_accessed = (
        x.size * x.dtype.itemsize
        + sum(int(a.size) * a.dtype.itemsize for a in prepped)
        + batch * D_OUT * jnp.dtype(out_dtype).itemsize
    )
    cost = pl.CostEstimate(flops=flops,
                           transcendentals=batch * D_OUT,
                           bytes_accessed=bytes_accessed)

    return pl.pallas_call(
        generator_kernel,
        out_shape=jax.ShapeDtypeStruct((batch, D_OUT), out_dtype),
        grid=grid,
        in_specs=in_specs,
        out_specs=out_spec,
        compiler_params=pltpu.CompilerParams(
            dimension_semantics=("parallel",),      # both TCs on v7x
            vmem_limit_bytes=VMEM_LIMIT_BYTES),
        cost_estimate=cost,
    )(x, w1, b1, w2, b2, w3, b3)


def generator_forward(x, prepped, out_dtype=jnp.float32):
    """x: [B, 100] f32, prepped: output of prepare_params. Returns [B, 784]."""
    tile_b = _choose_tile_b(x.shape[0])
    return _generator_call(x, prepped, tile_b, out_dtype)


def reference_forward(x, params):
    """Plain-JAX reference with the same bf16-weight / f32-accumulate numerics."""
    w1, b1, w2, b2, w3, b3 = params
    bf = jnp.bfloat16
    h = _leaky_relu(jnp.dot(x.astype(bf), w1.astype(bf),
                            preferred_element_type=jnp.float32) + b1, NEG_SLOPE)
    h = _leaky_relu(jnp.dot(h.astype(bf), w2.astype(bf),
                            preferred_element_type=jnp.float32) + b2, NEG_SLOPE)
    h = _leaky_relu(jnp.dot(h.astype(bf), w3.astype(bf),
                            preferred_element_type=jnp.float32) + b3, NEG_SLOPE)
    return jnp.tanh(h)


if __name__ == "__main__":
    key = jax.random.PRNGKey(0)
    k_x, k_x2, k_p = jax.random.split(key, 3)

    params = init_params(k_p)
    prepped = prepare_params(params)

    # Small batch (single grid step, full-extent small block).
    B = 8
    x = jax.random.normal(k_x, (B, D_IN), jnp.float32)
    out = jax.block_until_ready(generator_forward(x, prepped))
    ref = reference_forward(x, params)
    assert out.shape == (B, D_OUT), out.shape
    assert jnp.allclose(out, ref, atol=1e-3, rtol=1e-3), "mismatch vs reference (B=8)"

    # Larger, non-aligned batch: 2 parallel grid steps, partial (masked) last tile.
    B2 = 300
    x2 = jax.random.normal(k_x2, (B2, D_IN), jnp.float32)
    out2 = jax.block_until_ready(generator_forward(x2, prepped))
    ref2 = reference_forward(x2, params)
    assert out2.shape == (B2, D_OUT), out2.shape
    assert jnp.allclose(out2, ref2, atol=1e-3, rtol=1e-3), "mismatch vs reference (B=300)"

    print("KERNEL_OK")
</pallas_src>

<mosaic_0001>
module attributes {stable_mosaic.version = 11 : i64} {
  func.func @generator_kernel(%arg0: i32, %arg1: memref<8x100xf32, #tpu.memory_space<vmem>>, %arg2: memref<100x256xbf16, #tpu.memory_space<vmem>>, %arg3: memref<1x256xf32, #tpu.memory_space<vmem>>, %arg4: memref<256x512xbf16, #tpu.memory_space<vmem>>, %arg5: memref<1x512xf32, #tpu.memory_space<vmem>>, %arg6: memref<512x784xbf16, #tpu.memory_space<vmem>>, %arg7: memref<1x784xf32, #tpu.memory_space<vmem>>, %arg8: memref<8x784xf32, #tpu.memory_space<vmem>>) attributes {dimension_semantics = [#tpu.dimension_semantics<parallel>], iteration_bounds = array<i64: 1>, scalar_prefetch = 0 : i64, scratch_operands = 0 : i64, tpu.core_type = #tpu.core_type<tc>, window_params = [{transform_indices = @transform_0, window_bounds = array<i64: 8, 100>}, {pipeline_mode = #tpu.pipeline_mode<synchronous>, transform_indices = @transform_1, window_bounds = array<i64: 100, 256>}, {pipeline_mode = #tpu.pipeline_mode<synchronous>, transform_indices = @transform_2, window_bounds = array<i64: 1, 256>}, {pipeline_mode = #tpu.pipeline_mode<synchronous>, transform_indices = @transform_3, window_bounds = array<i64: 256, 512>}, {pipeline_mode = #tpu.pipeline_mode<synchronous>, transform_indices = @transform_4, window_bounds = array<i64: 1, 512>}, {pipeline_mode = #tpu.pipeline_mode<synchronous>, transform_indices = @transform_5, window_bounds = array<i64: 512, 784>}, {pipeline_mode = #tpu.pipeline_mode<synchronous>, transform_indices = @transform_6, window_bounds = array<i64: 1, 784>}, {transform_indices = @transform_7, window_bounds = array<i64: 8, 784>}]} {
    %c0 = arith.constant 0 : index
    %c0_0 = arith.constant 0 : index
    %0 = vector.load %arg1[%c0, %c0_0] : memref<8x100xf32, #tpu.memory_space<vmem>>, vector<8x100xf32>
    %1 = arith.truncf %0 : vector<8x100xf32> to vector<8x100xbf16>
    %c0_1 = arith.constant 0 : index
    %c0_2 = arith.constant 0 : index
    %2 = vector.load %arg2[%c0_1, %c0_2] : memref<100x256xbf16, #tpu.memory_space<vmem>>, vector<100x256xbf16>
    %cst = arith.constant dense<0.000000e+00> : vector<8x256xf32>
    %3 = tpu.matmul %1, %2, %cst {dimension_numbers = #tpu.dot_dimension_numbers<[1], [0], [0], [1], [0, 0, 1, 1], [], []>} : vector<8x100xbf16>, vector<100x256xbf16>, vector<8x256xf32> -> vector<8x256xf32>
    %c0_3 = arith.constant 0 : index
    %c0_4 = arith.constant 0 : index
    %4 = vector.load %arg3[%c0_3, %c0_4] : memref<1x256xf32, #tpu.memory_space<vmem>>, vector<1x256xf32>
    %5 = vector.broadcast %4 : vector<1x256xf32> to vector<8x256xf32>
    %6 = arith.addf %3, %5 : vector<8x256xf32>
    %cst_5 = arith.constant 0.000000e+00 : f32
    %7 = vector.broadcast %cst_5 : f32 to vector<8x256xf32>
    %8 = arith.cmpf oge, %6, %7 : vector<8x256xf32>
    %cst_6 = arith.constant 3.000000e-01 : f32
    %9 = vector.broadcast %cst_6 : f32 to vector<8x256xf32>
    %10 = arith.mulf %9, %6 : vector<8x256xf32>
    %11 = arith.select %8, %6, %10 : vector<8x256xi1>, vector<8x256xf32>
    %12 = arith.truncf %11 : vector<8x256xf32> to vector<8x256xbf16>
    %c0_7 = arith.constant 0 : index
    %c0_8 = arith.constant 0 : index
    %13 = vector.load %arg4[%c0_7, %c0_8] : memref<256x512xbf16, #tpu.memory_space<vmem>>, vector<256x512xbf16>
    %cst_9 = arith.constant dense<0.000000e+00> : vector<8x512xf32>
    %14 = tpu.matmul %12, %13, %cst_9 {dimension_numbers = #tpu.dot_dimension_numbers<[1], [0], [0], [1], [0, 0, 1, 1], [], []>} : vector<8x256xbf16>, vector<256x512xbf16>, vector<8x512xf32> -> vector<8x512xf32>
    %c0_10 = arith.constant 0 : index
    %c0_11 = arith.constant 0 : index
    %15 = vector.load %arg5[%c0_10, %c0_11] : memref<1x512xf32, #tpu.memory_space<vmem>>, vector<1x512xf32>
    %16 = vector.broadcast %15 : vector<1x512xf32> to vector<8x512xf32>
    %17 = arith.addf %14, %16 : vector<8x512xf32>
    %cst_12 = arith.constant 0.000000e+00 : f32
    %18 = vector.broadcast %cst_12 : f32 to vector<8x512xf32>
    %19 = arith.cmpf oge, %17, %18 : vector<8x512xf32>
    %cst_13 = arith.constant 3.000000e-01 : f32
    %20 = vector.broadcast %cst_13 : f32 to vector<8x512xf32>
    %21 = arith.mulf %20, %17 : vector<8x512xf32>
    %22 = arith.select %19, %17, %21 : vector<8x512xi1>, vector<8x512xf32>
    %23 = arith.truncf %22 : vector<8x512xf32> to vector<8x512xbf16>
    %c0_14 = arith.constant 0 : index
    %c0_15 = arith.constant 0 : index
    %24 = vector.load %arg6[%c0_14, %c0_15] : memref<512x784xbf16, #tpu.memory_space<vmem>>, vector<512x784xbf16>
    %cst_16 = arith.constant dense<0.000000e+00> : vector<8x784xf32>
    %25 = tpu.matmul %23, %24, %cst_16 {dimension_numbers = #tpu.dot_dimension_numbers<[1], [0], [0], [1], [0, 0, 1, 1], [], []>} : vector<8x512xbf16>, vector<512x784xbf16>, vector<8x784xf32> -> vector<8x784xf32>
    %c0_17 = arith.constant 0 : index
    %c0_18 = arith.constant 0 : index
    %26 = vector.load %arg7[%c0_17, %c0_18] : memref<1x784xf32, #tpu.memory_space<vmem>>, vector<1x784xf32>
    %27 = vector.broadcast %26 : vector<1x784xf32> to vector<8x784xf32>
    %28 = arith.addf %25, %27 : vector<8x784xf32>
    %cst_19 = arith.constant 0.000000e+00 : f32
    %29 = vector.broadcast %cst_19 : f32 to vector<8x784xf32>
    %30 = arith.cmpf oge, %28, %29 : vector<8x784xf32>
    %cst_20 = arith.constant 3.000000e-01 : f32
    %31 = vector.broadcast %cst_20 : f32 to vector<8x784xf32>
    %32 = arith.mulf %31, %28 : vector<8x784xf32>
    %33 = arith.select %30, %28, %32 : vector<8x784xi1>, vector<8x784xf32>
    %34 = math.tanh %33 : vector<8x784xf32>
    %c0_21 = arith.constant 0 : index
    %c0_22 = arith.constant 0 : index
    %35 = vector.load %arg8[%c0_21, %c0_22] : memref<8x784xf32, #tpu.memory_space<vmem>>, vector<8x784xf32>
    tpu.vector_store %arg8[%c0_21, %c0_22], %34 {strides = array<i32>} : memref<8x784xf32, #tpu.memory_space<vmem>>, vector<8x784xf32>,
    return
  }
  func.func @transform_0(%arg0: i32) -> (i32, i32) {
    %c0_i32 = arith.constant 0 : i32
    %c0_i32_0 = arith.constant 0 : i32
    return %arg0, %c0_i32 : i32, i32
  }
  func.func @transform_1(%arg0: i32) -> (i32, i32) {
    %c0_i32 = arith.constant 0 : i32
    %c0_i32_0 = arith.constant 0 : i32
    %c0_i32_1 = arith.constant 0 : i32
    return %c0_i32, %c0_i32_0 : i32, i32
  }
  func.func @transform_2(%arg0: i32) -> (i32, i32) {
    %c0_i32 = arith.constant 0 : i32
    %c0_i32_0 = arith.constant 0 : i32
    %c0_i32_1 = arith.constant 0 : i32
    return %c0_i32, %c0_i32_0 : i32, i32
  }
  func.func @transform_3(%arg0: i32) -> (i32, i32) {
    %c0_i32 = arith.constant 0 : i32
    %c0_i32_0 = arith.constant 0 : i32
    %c0_i32_1 = arith.constant 0 : i32
    return %c0_i32, %c0_i32_0 : i32, i32
  }
  func.func @transform_4(%arg0: i32) -> (i32, i32) {
    %c0_i32 = arith.constant 0 : i32
    %c0_i32_0 = arith.constant 0 : i32
    %c0_i32_1 = arith.constant 0 : i32
    return %c0_i32, %c0_i32_0 : i32, i32
  }
  func.func @transform_5(%arg0: i32) -> (i32, i32) {
    %c0_i32 = arith.constant 0 : i32
    %c0_i32_0 = arith.constant 0 : i32
    %c0_i32_1 = arith.constant 0 : i32
    return %c0_i32, %c0_i32_0 : i32, i32
  }
  func.func @transform_6(%arg0: i32) -> (i32, i32) {
    %c0_i32 = arith.constant 0 : i32
    %c0_i32_0 = arith.constant 0 : i32
    %c0_i32_1 = arith.constant 0 : i32
    return %c0_i32, %c0_i32_0 : i32, i32
  }
  func.func @transform_7(%arg0: i32) -> (i32, i32) {
    %c0_i32 = arith.constant 0 : i32
    %c0_i32_0 = arith.constant 0 : i32
    return %arg0, %c0_i32 : i32, i32
  }
}

</mosaic_0001>

<llo_original>
// kernel: _generator_call.1
$region0: #{_generator_call.1}
  #allocation0 [shape = 'u32[]', space=smem, size = 0x4, offset = 0x4, fixed_abs, tag = 'smem constant byte address 0x4 - core index']
  #allocation1 [shape = 'u32[72,128]{1,0:T(1,128)}', space=vmem, size = 0x9000, scoped, tag = 'internal scratch']
  %s0 = inlined_call_operand.vmem [shape: f32[8,100], index: 0, kind: input, shape index: {}]
  %s1 = inlined_call_operand.vmem [shape: bf16[100,256], index: 1, kind: input, shape index: {}]
  %s2 = inlined_call_operand.vmem [shape: f32[1,256], index: 2, kind: input, shape index: {}]
  %s3 = inlined_call_operand.vmem [shape: bf16[256,512], index: 3, kind: input, shape index: {}]
  %s4 = inlined_call_operand.vmem [shape: f32[1,512], index: 4, kind: input, shape index: {}]
  %s5 = inlined_call_operand.vmem [shape: bf16[512,784], index: 5, kind: input, shape index: {}]
  %s6 = inlined_call_operand.vmem [shape: f32[1,784], index: 6, kind: input, shape index: {}]
  %s7 = inlined_call_operand.hbm [shape: f32[8,784], index: 7, kind: output, shape index: {}]
  %s8 = sld [smem:[#allocation0]]
  $region38: #{_generator_call.1} parent=0
    _
  %s10 = ssub.s32 1, %s8
  %s11 = scalar_select 0, %s10, %s8
  $region1: #{_generator_call.1} parent=0
    #allocation2 [shape = 'u8[28672]{0}', space=vmem, size = 0x7000, scoped, tag = 'output window, operand 0, single buffered']
    #allocation3 [shape = 's32[1]{0}', space=sflag, size = 0x4, scoped, tag = 'scoped memory for _generator_call.1']
    %12 = vsyncpa [#allocation3], 0
    // Predicated region
    $region2: #{_generator_call.1} parent=1 // pred_check
      _
    $region3: #{_generator_call.1} parent=1 // pred_check_branch
      %14 = sbr.rel (0) target = $region5
    $region4: #{_generator_call.1} parent=1 // pred_region
      _
    $region5: #{_generator_call.1} parent=1 // pred_fallthru
      _
    // Predicated region
    $region6: #{_generator_call.1} parent=1 // pred_check
      _
    $region7: #{_generator_call.1} parent=1 // pred_check_branch
      %16 = sbr.rel (0) target = $region9
    $region8: #{_generator_call.1} parent=1 // pred_region
      _
    $region9: #{_generator_call.1} parent=1 // pred_fallthru
      _
    // Predicated region
    $region10: #{_generator_call.1} parent=1 // pred_check
      _
    $region11: #{_generator_call.1} parent=1 // pred_check_branch
      %18 = sbr.rel (0) target = $region13
    $region12: #{_generator_call.1} parent=1 // pred_region
      _
    $region13: #{_generator_call.1} parent=1 // pred_fallthru
      _
    // Predicated region
    $region14: #{_generator_call.1} parent=1 // pred_check
      _
    $region15: #{_generator_call.1} parent=1 // pred_check_branch
      %20 = sbr.rel (0) target = $region17
    $region16: #{_generator_call.1} parent=1 // pred_region
      _
    $region17: #{_generator_call.1} parent=1 // pred_fallthru
      _
    // Predicated region
    $region18: #{_generator_call.1} parent=1 // pred_check
      _
    $region19: #{_generator_call.1} parent=1 // pred_check_branch
      %22 = sbr.rel (0) target = $region21
    $region20: #{_generator_call.1} parent=1 // pred_region
      _
    $region21: #{_generator_call.1} parent=1 // pred_fallthru
      _
    // Predicated region
    $region22: #{_generator_call.1} parent=1 // pred_check
      _
    $region23: #{_generator_call.1} parent=1 // pred_check_branch
      %24 = sbr.rel (0) target = $region25
    $region24: #{_generator_call.1} parent=1 // pred_region
      _
    $region25: #{_generator_call.1} parent=1 // pred_fallthru
      _
    // Predicated region
    $region26: #{_generator_call.1} parent=1 // pred_check
      _
    $region27: #{_generator_call.1} parent=1 // pred_check_branch
      %26 = sbr.rel (0) target = $region29
    $region28: #{_generator_call.1} parent=1 // pred_region
      _
    $region29: #{_generator_call.1} parent=1 // pred_fallthru
      _
    %v28 = vld [vmem:[%s0] sm:$0xff]
    %v29 = vpack.c.bf16 %v28, %v28
    %v30 = vld [vmem:[%s1] sm:$0xff]
    %v31 = vld [vmem:[%s1 + $0x8] sm:$0xff]
    %v32 = vld [vmem:[%s1 + $0x10] sm:$0xff]
    %v33 = vld [vmem:[%s1 + $0x18] sm:$0xff]
    %v34 = vld [vmem:[%s1 + $0x20] sm:$0xff]
    %v35 = vld [vmem:[%s1 + $0x28] sm:$0xff]
    %v36 = vld [vmem:[%s1 + $0x30] sm:$0xff]
    %v37 = vld [vmem:[%s1 + $0x38] sm:$0xff]
    %v38 = vld [vmem:[%s1 + $0x40] sm:$0xff]
    %v39 = vld [vmem:[%s1 + $0x48] sm:$0xff]
    %v40 = vld [vmem:[%s1 + $0x50] sm:$0xff]
    %v41 = vld [vmem:[%s1 + $0x58] sm:$0xff]
    %v42 = vld [vmem:[%s1 + $0x60] sm:$0x33]
    %v43 = vld [vmem:[%s2] sm:$0x3]
    %v45 = vperm.slane %v43, 0
    %v46 = vperm.slane %v43, 1
    %v62 = vunpack.c.l.b16 %v30
    %v63 = vunpack.c.h.b16 %v30
    %v64 = vunpack.c.l.b16 %v31
    %v65 = vunpack.c.h.b16 %v31
    %v66 = vunpack.c.l.b16 %v32
    %v67 = vunpack.c.h.b16 %v32
    %v68 = vunpack.c.l.b16 %v33
    %v69 = vunpack.c.h.b16 %v33
    %v70 = vunpack.c.l.b16 %v34
    %v71 = vunpack.c.h.b16 %v34
    %v72 = vunpack.c.l.b16 %v35
    %v73 = vunpack.c.h.b16 %v35
    %v74 = vunpack.c.l.b16 %v36
    %v75 = vunpack.c.h.b16 %v36
    %v76 = vunpack.c.l.b16 %v37
    %v77 = vunpack.c.h.b16 %v37
    %v78 = vunpack.c.l.b16 %v38
    %v79 = vunpack.c.h.b16 %v38
    %v80 = vunpack.c.l.b16 %v39
    %v81 = vunpack.c.h.b16 %v39
    %v82 = vunpack.c.l.b16 %v40
    %v83 = vunpack.c.h.b16 %v40
    %v84 = vunpack.c.l.b16 %v41
    %v85 = vunpack.c.h.b16 %v41
    %v86 = vunpack.c.l.b16 %v42
    %v87 = vunpack.c.h.b16 %v42
    %v88 = vpack.c.b16 %v64, %v62
    %v89 = vpack.c.b16 %v65, %v63
    %v90 = vpack.c.b16 %v68, %v66
    %v91 = vpack.c.b16 %v69, %v67
    %v92 = vpack.c.b16 %v72, %v70
    %v93 = vpack.c.b16 %v73, %v71
    %v94 = vpack.c.b16 %v76, %v74
    %v95 = vpack.c.b16 %v77, %v75
    %v96 = vpack.c.b16 %v80, %v78
    %v97 = vpack.c.b16 %v81, %v79
    %v98 = vpack.c.b16 %v84, %v82
    %v99 = vpack.c.b16 %v85, %v83
    %v100 = vpack.c.b16 %v86, %v86
    %v101 = vpack.c.b16 %v87, %v87
    %vm114 = vcmask 818176
    %v116 = vsel %vm114, %v29, 0
    %vm118 = vcmask 1041408
    %v120 = vsel %vm118, %v100, 0
    %v123 = vsel %vm118, %v101, 0
    %125 = vmatpush.bf16.msra.mxu0 0
    %126 = vmatpush.bf16.msra.mxu0 %v120
    %127 = vmatpush.bf16.msra.mxu0 %v98
    %128 = vmatpush.bf16.msra.mxu0 %v96
    %129 = vmatpush.bf16.msra.mxu0 %v94
    %130 = vmatpush.bf16.msra.mxu0 %v92
    %131 = vmatpush.bf16.msra.mxu0 %v90
    %132 = vmatpush.bf16.msra.mxu0 %v88
    %133 = vmatmul.bf16.gmra.mxu0 %v116
    %v134 = vpop.f32.mrf.mxu0
    %v135 = vadd.f32 %v45, %v134
    %v136 = vpop.f32.mrf.mxu0
    %137 = vdwg.mxu0
    %138 = vmatpush.bf16.msra.mxu0 0
    %139 = vmatpush.bf16.msra.mxu0 %v123
    %140 = vmatpush.bf16.msra.mxu0 %v99
    %141 = vmatpush.bf16.msra.mxu0 %v97
    %142 = vmatpush.bf16.msra.mxu0 %v95
    %143 = vmatpush.bf16.msra.mxu0 %v93
    %144 = vmatpush.bf16.msra.mxu0 %v91
    %145 = vmatpush.bf16.msra.mxu0 %v89
    %146 = vmatmul.bf16.gmra.mxu0 %v116
    %v147 = vpop.f32.mrf.mxu0
    %v148 = vadd.f32 %v46, %v147
    %v149 = vpop.f32.mrf.mxu0
    %150 = vdwg.mxu0
    %vm151 = vcmp.ge.f32.partialorder %v135, 0.0
    %vm152 = vcmp.ge.f32.partialorder %v148, 0.0
    %v153 = vmul.f32 %v135, 0.3
    %v154 = vmul.f32 %v148, 0.3
    %v155 = vsel %vm151, %v135, %v153
    %v156 = vsel %vm152, %v148, %v154
    %v157 = vpack.c.bf16 %v155, %v155
    %v158 = vpack.c.bf16 %v156, %v156
    %v159 = vld [vmem:[%s3] sm:$0xff]
    %v160 = vld [vmem:[%s3 + $0x8] sm:$0xff]
    %v161 = vld [vmem:[%s3 + $0x10] sm:$0xff]
    %v162 = vld [vmem:[%s3 + $0x18] sm:$0xff]
    %v163 = vld [vmem:[%s3 + $0x20] sm:$0xff]
    %v164 = vld [vmem:[%s3 + $0x28] sm:$0xff]
    %v165 = vld [vmem:[%s3 + $0x30] sm:$0xff]
    %v166 = vld [vmem:[%s3 + $0x38] sm:$0xff]
    %v167 = vld [vmem:[%s3 + $0x40] sm:$0xff]
    %v168 = vld [vmem:[%s3 + $0x48] sm:$0xff]
    %v169 = vld [vmem:[%s3 + $0x50] sm:$0xff]
    %v170 = vld [vmem:[%s3 + $0x58] sm:$0xff]
    %v171 = vld [vmem:[%s3 + $0x60] sm:$0xff]
    %v172 = vld [vmem:[%s3 + $0x68] sm:$0xff]
    %v173 = vld [vmem:[%s3 + $0x70] sm:$0xff]
    %v174 = vld [vmem:[%s3 + $0x78] sm:$0xff]
    %v175 = vld [vmem:[%s3 + $0x80] sm:$0xff]
    %v176 = vld [vmem:[%s3 + $0x88] sm:$0xff]
    %v177 = vld [vmem:[%s3 + $0x90] sm:$0xff]
    %v178 = vld [vmem:[%s3 + $0x98] sm:$0xff]
    %v179 = vld [vmem:[%s3 + $0xa0] sm:$0xff]
    %v180 = vld [vmem:[%s3 + $0xa8] sm:$0xff]
    %v181 = vld [vmem:[%s3 + $0xb0] sm:$0xff]
    %v182 = vld [vmem:[%s3 + $0xb8] sm:$0xff]
    %v183 = vld [vmem:[%s3 + $0xc0] sm:$0xff]
    %v184 = vld [vmem:[%s3 + $0xc8] sm:$0xff]
    %v185 = vld [vmem:[%s3 + $0xd0] sm:$0xff]
    %v186 = vld [vmem:[%s3 + $0xd8] sm:$0xff]
    %v187 = vld [vmem:[%s3 + $0xe0] sm:$0xff]
    %v188 = vld [vmem:[%s3 + $0xe8] sm:$0xff]
    %v189 = vld [vmem:[%s3 + $0xf0] sm:$0xff]
    %v190 = vld [vmem:[%s3 + $0xf8] sm:$0xff]
    %v191 = vld [vmem:[%s3 + $0x100] sm:$0xff]
    %v192 = vld [vmem:[%s3 + $0x108] sm:$0xff]
    %v193 = vld [vmem:[%s3 + $0x110] sm:$0xff]
    %v194 = vld [vmem:[%s3 + $0x118] sm:$0xff]
    %v195 = vld [vmem:[%s3 + $0x120] sm:$0xff]
    %v196 = vld [vmem:[%s3 + $0x128] sm:$0xff]
    %v197 = vld [vmem:[%s3 + $0x130] sm:$0xff]
    %v198 = vld [vmem:[%s3 + $0x138] sm:$0xff]
    %v199 = vld [vmem:[%s3 + $0x140] sm:$0xff]
    %v200 = vld [vmem:[%s3 + $0x148] sm:$0xff]
    %v201 = vld [vmem:[%s3 + $0x150] sm:$0xff]
    %v202 = vld [vmem:[%s3 + $0x158] sm:$0xff]
    %v203 = vld [vmem:[%s3 + $0x160] sm:$0xff]
    %v204 = vld [vmem:[%s3 + $0x168] sm:$0xff]
    %v205 = vld [vmem:[%s3 + $0x170] sm:$0xff]
    %v206 = vld [vmem:[%s3 + $0x178] sm:$0xff]
    %v207 = vld [vmem:[%s3 + $0x180] sm:$0xff]
    %v208 = vld [vmem:[%s3 + $0x188] sm:$0xff]
    %v209 = vld [vmem:[%s3 + $0x190] sm:$0xff]
    %v210 = vld [vmem:[%s3 + $0x198] sm:$0xff]
    %v211 = vld [vmem:[%s3 + $0x1a0] sm:$0xff]
    %v212 = vld [vmem:[%s3 + $0x1a8] sm:$0xff]
    %v213 = vld [vmem:[%s3 + $0x1b0] sm:$0xff]
    %v214 = vld [vmem:[%s3 + $0x1b8] sm:$0xff]
    %v215 = vld [vmem:[%s3 + $0x1c0] sm:$0xff]
    %v216 = vld [vmem:[%s3 + $0x1c8] sm:$0xff]
    %v217 = vld [vmem:[%s3 + $0x1d0] sm:$0xff]
    %v218 = vld [vmem:[%s3 + $0x1d8] sm:$0xff]
    %v219 = vld [vmem:[%s3 + $0x1e0] sm:$0xff]
    %v220 = vld [vmem:[%s3 + $0x1e8] sm:$0xff]
    %v221 = vld [vmem:[%s3 + $0x1f0] sm:$0xff]
    %v222 = vld [vmem:[%s3 + $0x1f8] sm:$0xff]
    %v223 = vld [vmem:[%s4] sm:$0xf]
    %v225 = vperm.slane %v223, 0
    %v226 = vperm.slane %v223, 1
    %v227 = vperm.slane %v223, 2
    %v228 = vperm.slane %v223, 3
    %v297 = vunpack.c.l.b16 %v159
    %v298 = vunpack.c.h.b16 %v159
    %v299 = vunpack.c.l.b16 %v160
    %v300 = vunpack.c.h.b16 %v160
    %v301 = vunpack.c.l.b16 %v161
    %v302 = vunpack.c.h.b16 %v161
    %v303 = vunpack.c.l.b16 %v162
    %v304 = vunpack.c.h.b16 %v162
    %v305 = vunpack.c.l.b16 %v163
    %v306 = vunpack.c.h.b16 %v163
    %v307 = vunpack.c.l.b16 %v164
    %v308 = vunpack.c.h.b16 %v164
    %v309 = vunpack.c.l.b16 %v165
    %v310 = vunpack.c.h.b16 %v165
    %v311 = vunpack.c.l.b16 %v166
    %v312 = vunpack.c.h.b16 %v166
    %v313 = vunpack.c.l.b16 %v167
    %v314 = vunpack.c.h.b16 %v167
    %v315 = vunpack.c.l.b16 %v168
    %v316 = vunpack.c.h.b16 %v168
    %v317 = vunpack.c.l.b16 %v169
    %v318 = vunpack.c.h.b16 %v169
    %v319 = vunpack.c.l.b16 %v170
    %v320 = vunpack.c.h.b16 %v170
    %v321 = vunpack.c.l.b16 %v171
    %v322 = vunpack.c.h.b16 %v171
    %v323 = vunpack.c.l.b16 %v172
    %v324 = vunpack.c.h.b16 %v172
    %v325 = vunpack.c.l.b16 %v173
    %v326 = vunpack.c.h.b16 %v173
    %v327 = vunpack.c.l.b16 %v174
    %v328 = vunpack.c.h.b16 %v174
    %v329 = vunpack.c.l.b16 %v175
    %v330 = vunpack.c.h.b16 %v175
    %v331 = vunpack.c.l.b16 %v176
    %v332 = vunpack.c.h.b16 %v176
    %v333 = vunpack.c.l.b16 %v177
    %v334 = vunpack.c.h.b16 %v177
    %v335 = vunpack.c.l.b16 %v178
    %v336 = vunpack.c.h.b16 %v178
    %v337 = vunpack.c.l.b16 %v179
    %v338 = vunpack.c.h.b16 %v179
    %v339 = vunpack.c.l.b16 %v180
    %v340 = vunpack.c.h.b16 %v180
    %v341 = vunpack.c.l.b16 %v181
    %v342 = vunpack.c.h.b16 %v181
    %v343 = vunpack.c.l.b16 %v182
    %v344 = vunpack.c.h.b16 %v182
    %v345 = vunpack.c.l.b16 %v183
    %v346 = vunpack.c.h.b16 %v183
    %v347 = vunpack.c.l.b16 %v184
    %v348 = vunpack.c.h.b16 %v184
    %v349 = vunpack.c.l.b16 %v185
    %v350 = vunpack.c.h.b16 %v185
    %v351 = vunpack.c.l.b16 %v186
    %v352 = vunpack.c.h.b16 %v186
    %v353 = vunpack.c.l.b16 %v187
    %v354 = vunpack.c.h.b16 %v187
    %v355 = vunpack.c.l.b16 %v188
    %v356 = vunpack.c.h.b16 %v188
    %v357 = vunpack.c.l.b16 %v189
    %v358 = vunpack.c.h.b16 %v189
    %v359 = vunpack.c.l.b16 %v190
    %v360 = vunpack.c.h.b16 %v190
    %v361 = vunpack.c.l.b16 %v191
    %v362 = vunpack.c.h.b16 %v191
    %v363 = vunpack.c.l.b16 %v192
    %v364 = vunpack.c.h.b16 %v192
    %v365 = vunpack.c.l.b16 %v193
    %v366 = vunpack.c.h.b16 %v193
    %v367 = vunpack.c.l.b16 %v194
    %v368 = vunpack.c.h.b16 %v194
    %v369 = vunpack.c.l.b16 %v195
    %v370 = vunpack.c.h.b16 %v195
    %v371 = vunpack.c.l.b16 %v196
    %v372 = vunpack.c.h.b16 %v196
    %v373 = vunpack.c.l.b16 %v197
    %v374 = vunpack.c.h.b16 %v197
    %v375 = vunpack.c.l.b16 %v198
    %v376 = vunpack.c.h.b16 %v198
    %v377 = vunpack.c.l.b16 %v199
    %v378 = vunpack.c.h.b16 %v199
    %v379 = vunpack.c.l.b16 %v200
    %v380 = vunpack.c.h.b16 %v200
    %v381 = vunpack.c.l.b16 %v201
    %v382 = vunpack.c.h.b16 %v201
    %v383 = vunpack.c.l.b16 %v202
    %v384 = vunpack.c.h.b16 %v202
    %v385 = vunpack.c.l.b16 %v203
    %v386 = vunpack.c.h.b16 %v203
    %v387 = vunpack.c.l.b16 %v204
    %v388 = vunpack.c.h.b16 %v204
    %v389 = vunpack.c.l.b16 %v205
    %v390 = vunpack.c.h.b16 %v205
    %v391 = vunpack.c.l.b16 %v206
    %v392 = vunpack.c.h.b16 %v206
    %v393 = vunpack.c.l.b16 %v207
    %v394 = vunpack.c.h.b16 %v207
    %v395 = vunpack.c.l.b16 %v208
    %v396 = vunpack.c.h.b16 %v208
    %v397 = vunpack.c.l.b16 %v209
    %v398 = vunpack.c.h.b16 %v209
    %v399 = vunpack.c.l.b16 %v210
    %v400 = vunpack.c.h.b16 %v210
    %v401 = vunpack.c.l.b16 %v211
    %v402 = vunpack.c.h.b16 %v211
    %v403 = vunpack.c.l.b16 %v212
    %v404 = vunpack.c.h.b16 %v212
    %v405 = vunpack.c.l.b16 %v213
    %v406 = vunpack.c.h.b16 %v213
    %v407 = vunpack.c.l.b16 %v214
    %v408 = vunpack.c.h.b16 %v214
    %v409 = vunpack.c.l.b16 %v215
    %v410 = vunpack.c.h.b16 %v215
    %v411 = vunpack.c.l.b16 %v216
    %v412 = vunpack.c.h.b16 %v216
    %v413 = vunpack.c.l.b16 %v217
    %v414 = vunpack.c.h.b16 %v217
    %v415 = vunpack.c.l.b16 %v218
    %v416 = vunpack.c.h.b16 %v218
    %v417 = vunpack.c.l.b16 %v219
    %v418 = vunpack.c.h.b16 %v219
    %v419 = vunpack.c.l.b16 %v220
    %v420 = vunpack.c.h.b16 %v220
    %v421 = vunpack.c.l.b16 %v221
    %v422 = vunpack.c.h.b16 %v221
    %v423 = vunpack.c.l.b16 %v222
    %v424 = vunpack.c.h.b16 %v222
    %v425 = vpack.c.b16 %v301, %v297
    %v426 = vpack.c.b16 %v302, %v298
    %v427 = vpack.c.b16 %v303, %v299
    %v428 = vpack.c.b16 %v304, %v300
    %v429 = vpack.c.b16 %v309, %v305
    %v430 = vpack.c.b16 %v310, %v306
    %v431 = vpack.c.b16 %v311, %v307
    %v432 = vpack.c.b16 %v312, %v308
    %v433 = vpack.c.b16 %v317, %v313
    %v434 = vpack.c.b16 %v318, %v314
    %v435 = vpack.c.b16 %v319, %v315
    %v436 = vpack.c.b16 %v320, %v316
    %v437 = vpack.c.b16 %v325, %v321
    %v438 = vpack.c.b16 %v326, %v322
    %v439 = vpack.c.b16 %v327, %v323
    %v440 = vpack.c.b16 %v328, %v324
    %v441 = vpack.c.b16 %v333, %v329
    %v442 = vpack.c.b16 %v334, %v330
    %v443 = vpack.c.b16 %v335, %v331
    %v444 = vpack.c.b16 %v336, %v332
    %v445 = vpack.c.b16 %v341, %v337
    %v446 = vpack.c.b16 %v342, %v338
    %v447 = vpack.c.b16 %v343, %v339
    %v448 = vpack.c.b16 %v344, %v340
    %v449 = vpack.c.b16 %v349, %v345
    %v450 = vpack.c.b16 %v350, %v346
    %v451 = vpack.c.b16 %v351, %v347
    %v452 = vpack.c.b16 %v352, %v348
    %v453 = vpack.c.b16 %v357, %v353
    %v454 = vpack.c.b16 %v358, %v354
    %v455 = vpack.c.b16 %v359, %v355
    %v456 = vpack.c.b16 %v360, %v356
    %v457 = vpack.c.b16 %v365, %v361
    %v458 = vpack.c.b16 %v366, %v362
    %v459 = vpack.c.b16 %v367, %v363
    %v460 = vpack.c.b16 %v368, %v364
    %v461 = vpack.c.b16 %v373, %v369
    %v462 = vpack.c.b16 %v374, %v370
    %v463 = vpack.c.b16 %v375, %v371
    %v464 = vpack.c.b16 %v376, %v372
    %v465 = vpack.c.b16 %v381, %v377
    %v466 = vpack.c.b16 %v382, %v378
    %v467 = vpack.c.b16 %v383, %v379
    %v468 = vpack.c.b16 %v384, %v380
    %v469 = vpack.c.b16 %v389, %v385
    %v470 = vpack.c.b16 %v390, %v386
    %v471 = vpack.c.b16 %v391, %v387
    %v472 = vpack.c.b16 %v392, %v388
    %v473 = vpack.c.b16 %v397, %v393
    %v474 = vpack.c.b16 %v398, %v394
    %v475 = vpack.c.b16 %v399, %v395
    %v476 = vpack.c.b16 %v400, %v396
    %v477 = vpack.c.b16 %v405, %v401
    %v478 = vpack.c.b16 %v406, %v402
    %v479 = vpack.c.b16 %v407, %v403
    %v480 = vpack.c.b16 %v408, %v404
    %v481 = vpack.c.b16 %v413, %v409
    %v482 = vpack.c.b16 %v414, %v410
    %v483 = vpack.c.b16 %v415, %v411
    %v484 = vpack.c.b16 %v416, %v412
    %v485 = vpack.c.b16 %v421, %v417
    %v486 = vpack.c.b16 %v422, %v418
    %v487 = vpack.c.b16 %v423, %v419
    %v488 = vpack.c.b16 %v424, %v420
    %553 = vmatpush.bf16.msra.mxu0 %v453
    %554 = vmatpush.bf16.msra.mxu0 %v449
    %555 = vmatpush.bf16.msra.mxu0 %v445
    %556 = vmatpush.bf16.msra.mxu0 %v441
    %557 = vmatpush.bf16.msra.mxu0 %v437
    %558 = vmatpush.bf16.msra.mxu0 %v433
    %559 = vmatpush.bf16.msra.mxu0 %v429
    %560 = vmatpush.bf16.msra.mxu0 %v425
    %561 = vmatmul.bf16.gmra.mxu0 %v157
    %v562 = vpop.f32.mrf.mxu0
    %v563 = vadd.f32 %v225, %v562
    %v564 = vpop.f32.mrf.mxu0
    %565 = vdwg.mxu0
    %566 = vmatpush.bf16.msra.mxu0 %v485
    %567 = vmatpush.bf16.msra.mxu0 %v481
    %568 = vmatpush.bf16.msra.mxu0 %v477
    %569 = vmatpush.bf16.msra.mxu0 %v473
    %570 = vmatpush.bf16.msra.mxu0 %v469
    %571 = vmatpush.bf16.msra.mxu0 %v465
    %572 = vmatpush.bf16.msra.mxu0 %v461
    %573 = vmatpush.bf16.msra.mxu0 %v457
    %574 = vmatmul.bf16.gmra.mxu0 %v158
    %v575 = vpop.f32.mrf.mxu0
    %v576 = vadd.f32 %v563, %v575
    %v577 = vpop.f32.mrf.mxu0
    %578 = vdwg.mxu0
    %579 = vmatpush.bf16.msra.mxu0 %v454
    %580 = vmatpush.bf16.msra.mxu0 %v450
    %581 = vmatpush.bf16.msra.mxu0 %v446
    %582 = vmatpush.bf16.msra.mxu0 %v442
    %583 = vmatpush.bf16.msra.mxu0 %v438
    %584 = vmatpush.bf16.msra.mxu0 %v434
    %585 = vmatpush.bf16.msra.mxu0 %v430
    %586 = vmatpush.bf16.msra.mxu0 %v426
    %587 = vmatmul.bf16.gmra.mxu0 %v157
    %v588 = vpop.f32.mrf.mxu0
    %v589 = vadd.f32 %v226, %v588
    %v590 = vpop.f32.mrf.mxu0
    %591 = vdwg.mxu0
    %592 = vmatpush.bf16.msra.mxu0 %v486
    %593 = vmatpush.bf16.msra.mxu0 %v482
    %594 = vmatpush.bf16.msra.mxu0 %v478
    %595 = vmatpush.bf16.msra.mxu0 %v474
    %596 = vmatpush.bf16.msra.mxu0 %v470
    %597 = vmatpush.bf16.msra.mxu0 %v466
    %598 = vmatpush.bf16.msra.mxu0 %v462
    %599 = vmatpush.bf16.msra.mxu0 %v458
    %600 = vmatmul.bf16.gmra.mxu0 %v158
    %v601 = vpop.f32.mrf.mxu0
    %v602 = vadd.f32 %v589, %v601
    %v603 = vpop.f32.mrf.mxu0
    %604 = vdwg.mxu0
    %605 = vmatpush.bf16.msra.mxu0 %v455
    %606 = vmatpush.bf16.msra.mxu0 %v451
    %607 = vmatpush.bf16.msra.mxu0 %v447
    %608 = vmatpush.bf16.msra.mxu0 %v443
    %609 = vmatpush.bf16.msra.mxu0 %v439
    %610 = vmatpush.bf16.msra.mxu0 %v435
    %611 = vmatpush.bf16.msra.mxu0 %v431
    %612 = vmatpush.bf16.msra.mxu0 %v427
    %613 = vmatmul.bf16.gmra.mxu0 %v157
    %v614 = vpop.f32.mrf.mxu0
    %v615 = vadd.f32 %v227, %v614
    %v616 = vpop.f32.mrf.mxu0
    %617 = vdwg.mxu0
    %618 = vmatpush.bf16.msra.mxu0 %v487
    %619 = vmatpush.bf16.msra.mxu0 %v483
    %620 = vmatpush.bf16.msra.mxu0 %v479
    %621 = vmatpush.bf16.msra.mxu0 %v475
    %622 = vmatpush.bf16.msra.mxu0 %v471
    %623 = vmatpush.bf16.msra.mxu0 %v467
    %624 = vmatpush.bf16.msra.mxu0 %v463
    %625 = vmatpush.bf16.msra.mxu0 %v459
    %626 = vmatmul.bf16.gmra.mxu0 %v158
    %v627 = vpop.f32.mrf.mxu0
    %v628 = vadd.f32 %v615, %v627
    %v629 = vpop.f32.mrf.mxu0
    %630 = vdwg.mxu0
    %631 = vmatpush.bf16.msra.mxu0 %v456
    %632 = vmatpush.bf16.msra.mxu0 %v452
    %633 = vmatpush.bf16.msra.mxu0 %v448
    %634 = vmatpush.bf16.msra.mxu0 %v444
    %635 = vmatpush.bf16.msra.mxu0 %v440
    %636 = vmatpush.bf16.msra.mxu0 %v436
    %637 = vmatpush.bf16.msra.mxu0 %v432
    %638 = vmatpush.bf16.msra.mxu0 %v428
    %639 = vmatmul.bf16.gmra.mxu0 %v157
    %v640 = vpop.f32.mrf.mxu0
    %v641 = vadd.f32 %v228, %v640
    %v642 = vpop.f32.mrf.mxu0
    %643 = vdwg.mxu0
    %644 = vmatpush.bf16.msra.mxu0 %v488
    %645 = vmatpush.bf16.msra.mxu0 %v484
    %646 = vmatpush.bf16.msra.mxu0 %v480
    %647 = vmatpush.bf16.msra.mxu0 %v476
    %648 = vmatpush.bf16.msra.mxu0 %v472
    %649 = vmatpush.bf16.msra.mxu0 %v468
    %650 = vmatpush.bf16.msra.mxu0 %v464
    %651 = vmatpush.bf16.msra.mxu0 %v460
    %652 = vmatmul.bf16.gmra.mxu0 %v158
    %v653 = vpop.f32.mrf.mxu0
    %v654 = vadd.f32 %v641, %v653
    %v655 = vpop.f32.mrf.mxu0
    %656 = vdwg.mxu0
    %vm657 = vcmp.ge.f32.partialorder %v576, 0.0
    %vm658 = vcmp.ge.f32.partialorder %v602, 0.0
    %vm659 = vcmp.ge.f32.partialorder %v628, 0.0
    %vm660 = vcmp.ge.f32.partialorder %v654, 0.0
    %v661 = vmul.f32 %v576, 0.3
    %v662 = vmul.f32 %v602, 0.3
    %v663 = vmul.f32 %v628, 0.3
    %v664 = vmul.f32 %v654, 0.3
    %v665 = vsel %vm657, %v576, %v661
    %v666 = vsel %vm658, %v602, %v662
    %v667 = vsel %vm659, %v628, %v663
    %v668 = vsel %vm660, %v654, %v664
    %v669 = vpack.c.bf16 %v665, %v665
    %v670 = vpack.c.bf16 %v666, %v666
    %v671 = vpack.c.bf16 %v667, %v667
    %v672 = vpack.c.bf16 %v668, %v668
    %v673 = vld [vmem:[%s5] sm:$0xff]
    %v674 = vld [vmem:[%s5 + $0x8] sm:$0xff]
    %v675 = vld [vmem:[%s5 + $0x10] sm:$0xff]
    %v676 = vld [vmem:[%s5 + $0x18] sm:$0xf]
    %v677 = vld [vmem:[%s5 + $0x1c] sm:$0xff]
    %v678 = vld [vmem:[%s5 + $0x24] sm:$0xff]
    %v679 = vld [vmem:[%s5 + $0x2c] sm:$0xff]
    %v680 = vld [vmem:[%s5 + $0x34] sm:$0xf]
    %v681 = vld [vmem:[%s5 + $0x38] sm:$0xff]
    %v682 = vld [vmem:[%s5 + $0x40] sm:$0xff]
    %v683 = vld [vmem:[%s5 + $0x48] sm:$0xff]
    %v684 = vld [vmem:[%s5 + $0x50] sm:$0xf]
    %v685 = vld [vmem:[%s5 + $0x54] sm:$0xff]
    %v686 = vld [vmem:[%s5 + $0x5c] sm:$0xff]
    %v687 = vld [vmem:[%s5 + $0x64] sm:$0xff]
    %v688 = vld [vmem:[%s5 + $0x6c] sm:$0xf]
    %v689 = vld [vmem:[%s5 + $0x70] sm:$0xff]
    %v690 = vld [vmem:[%s5 + $0x78] sm:$0xff]
    %v691 = vld [vmem:[%s5 + $0x80] sm:$0xff]
    %v692 = vld [vmem:[%s5 + $0x88] sm:$0xf]
    %v693 = vld [vmem:[%s5 + $0x8c] sm:$0xff]
    %v694 = vld [vmem:[%s5 + $0x94] sm:$0xff]
    %v695 = vld [vmem:[%s5 + $0x9c] sm:$0xff]
    %v696 = vld [vmem:[%s5 + $0xa4] sm:$0xf]
    %v697 = vld [vmem:[%s5 + $0xa8] sm:$0xff]
    %v698 = vld [vmem:[%s5 + $0xb0] sm:$0xff]
    %v699 = vld [vmem:[%s5 + $0xb8] sm:$0xff]
    %v700 = vld [vmem:[%s5 + $0xc0] sm:$0xf]
    %v701 = vld [vmem:[%s5 + $0xc4] sm:$0xff]
    %v702 = vld [vmem:[%s5 + $0xcc] sm:$0xff]
    %v703 = vld [vmem:[%s5 + $0xd4] sm:$0xff]
    %v704 = vld [vmem:[%s5 + $0xdc] sm:$0xf]
    %v705 = vld [vmem:[%s5 + $0xe0] sm:$0xff]
    %v706 = vld [vmem:[%s5 + $0xe8] sm:$0xff]
    %v707 = vld [vmem:[%s5 + $0xf0] sm:$0xff]
    %v708 = vld [vmem:[%s5 + $0xf8] sm:$0xf]
    %v709 = vld [vmem:[%s5 + $0xfc] sm:$0xff]
    %v710 = vld [vmem:[%s5 + $0x104] sm:$0xff]
    %v711 = vld [vmem:[%s5 + $0x10c] sm:$0xff]
    %v712 = vld [vmem:[%s5 + $0x114] sm:$0xf]
    %v713 = vld [vmem:[%s5 + $0x118] sm:$0xff]
    %v714 = vld [vmem:[%s5 + $0x120] sm:$0xff]
    %v715 = vld [vmem:[%s5 + $0x128] sm:$0xff]
    %v716 = vld [vmem:[%s5 + $0x130] sm:$0xf]
    %v717 = vld [vmem:[%s5 + $0x134] sm:$0xff]
    %v718 = vld [vmem:[%s5 + $0x13c] sm:$0xff]
    %v719 = vld [vmem:[%s5 + $0x144] sm:$0xff]
    %v720 = vld [vmem:[%s5 + $0x14c] sm:$0xf]
    %v721 = vld [vmem:[%s5 + $0x150] sm:$0xff]
    %v722 = vld [vmem:[%s5 + $0x158] sm:$0xff]
    %v723 = vld [vmem:[%s5 + $0x160] sm:$0xff]
    %v724 = vld [vmem:[%s5 + $0x168] sm:$0xf]
    %v725 = vld [vmem:[%s5 + $0x16c] sm:$0xff]
    %v726 = vld [vmem:[%s5 + $0x174] sm:$0xff]
    %v727 = vld [vmem:[%s5 + $0x17c] sm:$0xff]
    %v728 = vld [vmem:[%s5 + $0x184] sm:$0xf]
    %v729 = vld [vmem:[%s5 + $0x188] sm:$0xff]
    %v730 = vld [vmem:[%s5 + $0x190] sm:$0xff]
    %v731 = vld [vmem:[%s5 + $0x198] sm:$0xff]
    %v732 = vld [vmem:[%s5 + $0x1a0] sm:$0xf]
    %v733 = vld [vmem:[%s5 + $0x1a4] sm:$0xff]
    %v734 = vld [vmem:[%s5 + $0x1ac] sm:$0xff]
    %v735 = vld [vmem:[%s5 + $0x1b4] sm:$0xff]
    %v736 = vld [vmem:[%s5 + $0x1bc] sm:$0xf]
    %v737 = vld [vmem:[%s5 + $0x1c0] sm:$0xff]
    %v738 = vld [vmem:[%s5 + $0x1c8] sm:$0xff]
    %v739 = vld [vmem:[%s5 + $0x1d0] sm:$0xff]
    %v740 = vld [vmem:[%s5 + $0x1d8] sm:$0xf]
    %v741 = vld [vmem:[%s5 + $0x1dc] sm:$0xff]
    %v742 = vld [vmem:[%s5 + $0x1e4] sm:$0xff]
    %v743 = vld [vmem:[%s5 + $0x1ec] sm:$0xff]
    %v744 = vld [vmem:[%s5 + $0x1f4] sm:$0xf]
    %v745 = vld [vmem:[%s5 + $0x1f8] sm:$0xff]
    %v746 = vld [vmem:[%s5 + $0x200] sm:$0xff]
    %v747 = vld [vmem:[%s5 + $0x208] sm:$0xff]
    %v748 = vld [vmem:[%s5 + $0x210] sm:$0xf]
    %v749 = vld [vmem:[%s5 + $0x214] sm:$0xff]
    %v750 = vld [vmem:[%s5 + $0x21c] sm:$0xff]
    %v751 = vld [vmem:[%s5 + $0x224] sm:$0xff]
    %v752 = vld [vmem:[%s5 + $0x22c] sm:$0xf]
    %v753 = vld [vmem:[%s5 + $0x230] sm:$0xff]
    %v754 = vld [vmem:[%s5 + $0x238] sm:$0xff]
    %v755 = vld [vmem:[%s5 + $0x240] sm:$0xff]
    %v756 = vld [vmem:[%s5 + $0x248] sm:$0xf]
    %v757 = vld [vmem:[%s5 + $0x24c] sm:$0xff]
    %v758 = vld [vmem:[%s5 + $0x254] sm:$0xff]
    %v759 = vld [vmem:[%s5 + $0x25c] sm:$0xff]
    %v760 = vld [vmem:[%s5 + $0x264] sm:$0xf]
    %v761 = vld [vmem:[%s5 + $0x268] sm:$0xff]
    %v762 = vld [vmem:[%s5 + $0x270] sm:$0xff]
    %v763 = vld [vmem:[%s5 + $0x278] sm:$0xff]
    %v764 = vld [vmem:[%s5 + $0x280] sm:$0xf]
    %v765 = vld [vmem:[%s5 + $0x284] sm:$0xff]
    %v766 = vld [vmem:[%s5 + $0x28c] sm:$0xff]
    %v767 = vld [vmem:[%s5 + $0x294] sm:$0xff]
    %v768 = vld [vmem:[%s5 + $0x29c] sm:$0xf]
    %v769 = vld [vmem:[%s5 + $0x2a0] sm:$0xff]
    %v770 = vld [vmem:[%s5 + $0x2a8] sm:$0xff]
    %v771 = vld [vmem:[%s5 + $0x2b0] sm:$0xff]
    %v772 = vld [vmem:[%s5 + $0x2b8] sm:$0xf]
    %v773 = vld [vmem:[%s5 + $0x2bc] sm:$0xff]
    %v774 = vld [vmem:[%s5 + $0x2c4] sm:$0xff]
    %v775 = vld [vmem:[%s5 + $0x2cc] sm:$0xff]
    %v776 = vld [vmem:[%s5 + $0x2d4] sm:$0xf]
    %v777 = vld [vmem:[%s5 + $0x2d8] sm:$0xff]
    %v778 = vld [vmem:[%s5 + $0x2e0] sm:$0xff]
    %v779 = vld [vmem:[%s5 + $0x2e8] sm:$0xff]
    %v780 = vld [vmem:[%s5 + $0x2f0] sm:$0xf]
    %v781 = vld [vmem:[%s5 + $0x2f4] sm:$0xff]
    %v782 = vld [vmem:[%s5 + $0x2fc] sm:$0xff]
    %v783 = vld [vmem:[%s5 + $0x304] sm:$0xff]
    %v784 = vld [vmem:[%s5 + $0x30c] sm:$0xf]
    %v785 = vld [vmem:[%s5 + $0x310] sm:$0xff]
    %v786 = vld [vmem:[%s5 + $0x318] sm:$0xff]
    %v787 = vld [vmem:[%s5 + $0x320] sm:$0xff]
    %v788 = vld [vmem:[%s5 + $0x328] sm:$0xf]
    %v789 = vld [vmem:[%s5 + $0x32c] sm:$0xff]
    %v790 = vld [vmem:[%s5 + $0x334] sm:$0xff]
    %v791 = vld [vmem:[%s5 + $0x33c] sm:$0xff]
    %v792 = vld [vmem:[%s5 + $0x344] sm:$0xf]
    %v793 = vld [vmem:[%s5 + $0x348] sm:$0xff]
    %v794 = vld [vmem:[%s5 + $0x350] sm:$0xff]
    %v795 = vld [vmem:[%s5 + $0x358] sm:$0xff]
    %v796 = vld [vmem:[%s5 + $0x360] sm:$0xf]
    %v797 = vld [vmem:[%s5 + $0x364] sm:$0xff]
    %v798 = vld [vmem:[%s5 + $0x36c] sm:$0xff]
    %v799 = vld [vmem:[%s5 + $0x374] sm:$0xff]
    %v800 = vld [vmem:[%s5 + $0x37c] sm:$0xf]
    %v801 = vld [vmem:[%s5 + $0x380] sm:$0xff]
    %v802 = vld [vmem:[%s5 + $0x388] sm:$0xff]
    %v803 = vld [vmem:[%s5 + $0x390] sm:$0xff]
    %v804 = vld [vmem:[%s5 + $0x398] sm:$0xf]
    %v805 = vld [vmem:[%s5 + $0x39c] sm:$0xff]
    %v806 = vld [vmem:[%s5 + $0x3a4] sm:$0xff]
    %v807 = vld [vmem:[%s5 + $0x3ac] sm:$0xff]
    %v808 = vld [vmem:[%s5 + $0x3b4] sm:$0xf]
    %v809 = vld [vmem:[%s5 + $0x3b8] sm:$0xff]
    %v810 = vld [vmem:[%s5 + $0x3c0] sm:$0xff]
    %v811 = vld [vmem:[%s5 + $0x3c8] sm:$0xff]
    %v812 = vld [vmem:[%s5 + $0x3d0] sm:$0xf]
    %v813 = vld [vmem:[%s5 + $0x3d4] sm:$0xff]
    %v814 = vld [vmem:[%s5 + $0x3dc] sm:$0xff]
    %v815 = vld [vmem:[%s5 + $0x3e4] sm:$0xff]
    %v816 = vld [vmem:[%s5 + $0x3ec] sm:$0xf]
    %v817 = vld [vmem:[%s5 + $0x3f0] sm:$0xff]
    %v818 = vld [vmem:[%s5 + $0x3f8] sm:$0xff]
    %v819 = vld [vmem:[%s5 + $0x400] sm:$0xff]
    %v820 = vld [vmem:[%s5 + $0x408] sm:$0xf]
    %v821 = vld [vmem:[%s5 + $0x40c] sm:$0xff]
    %v822 = vld [vmem:[%s5 + $0x414] sm:$0xff]
    %v823 = vld [vmem:[%s5 + $0x41c] sm:$0xff]
    %v824 = vld [vmem:[%s5 + $0x424] sm:$0xf]
    %v825 = vld [vmem:[%s5 + $0x428] sm:$0xff]
    %v826 = vld [vmem:[%s5 + $0x430] sm:$0xff]
    %v827 = vld [vmem:[%s5 + $0x438] sm:$0xff]
    %v828 = vld [vmem:[%s5 + $0x440] sm:$0xf]
    %v829 = vld [vmem:[%s5 + $0x444] sm:$0xff]
    %v830 = vld [vmem:[%s5 + $0x44c] sm:$0xff]
    %v831 = vld [vmem:[%s5 + $0x454] sm:$0xff]
    %v832 = vld [vmem:[%s5 + $0x45c] sm:$0xf]
    %v833 = vld [vmem:[%s5 + $0x460] sm:$0xff]
    %v834 = vld [vmem:[%s5 + $0x468] sm:$0xff]
    %v835 = vld [vmem:[%s5 + $0x470] sm:$0xff]
    %v836 = vld [vmem:[%s5 + $0x478] sm:$0xf]
    %v837 = vld [vmem:[%s5 + $0x47c] sm:$0xff]
    %v838 = vld [vmem:[%s5 + $0x484] sm:$0xff]
    %v839 = vld [vmem:[%s5 + $0x48c] sm:$0xff]
    %v840 = vld [vmem:[%s5 + $0x494] sm:$0xf]
    %v841 = vld [vmem:[%s5 + $0x498] sm:$0xff]
    %v842 = vld [vmem:[%s5 + $0x4a0] sm:$0xff]
    %v843 = vld [vmem:[%s5 + $0x4a8] sm:$0xff]
    %v844 = vld [vmem:[%s5 + $0x4b0] sm:$0xf]
    %v845 = vld [vmem:[%s5 + $0x4b4] sm:$0xff]
    %v846 = vld [vmem:[%s5 + $0x4bc] sm:$0xff]
    %v847 = vld [vmem:[%s5 + $0x4c4] sm:$0xff]
    %v848 = vld [vmem:[%s5 + $0x4cc] sm:$0xf]
    %v849 = vld [vmem:[%s5 + $0x4d0] sm:$0xff]
    %v850 = vld [vmem:[%s5 + $0x4d8] sm:$0xff]
    %v851 = vld [vmem:[%s5 + $0x4e0] sm:$0xff]
    %v852 = vld [vmem:[%s5 + $0x4e8] sm:$0xf]
    %v853 = vld [vmem:[%s5 + $0x4ec] sm:$0xff]
    %v854 = vld [vmem:[%s5 + $0x4f4] sm:$0xff]
    %v855 = vld [vmem:[%s5 + $0x4fc] sm:$0xff]
    %v856 = vld [vmem:[%s5 + $0x504] sm:$0xf]
    %v857 = vld [vmem:[%s5 + $0x508] sm:$0xff]
    %v858 = vld [vmem:[%s5 + $0x510] sm:$0xff]
    %v859 = vld [vmem:[%s5 + $0x518] sm:$0xff]
    %v860 = vld [vmem:[%s5 + $0x520] sm:$0xf]
    %v861 = vld [vmem:[%s5 + $0x524] sm:$0xff]
    %v862 = vld [vmem:[%s5 + $0x52c] sm:$0xff]
    %v863 = vld [vmem:[%s5 + $0x534] sm:$0xff]
    %v864 = vld [vmem:[%s5 + $0x53c] sm:$0xf]
    %v865 = vld [vmem:[%s5 + $0x540] sm:$0xff]
    %v866 = vld [vmem:[%s5 + $0x548] sm:$0xff]
    %v867 = vld [vmem:[%s5 + $0x550] sm:$0xff]
    %v868 = vld [vmem:[%s5 + $0x558] sm:$0xf]
    %v869 = vld [vmem:[%s5 + $0x55c] sm:$0xff]
    %v870 = vld [vmem:[%s5 + $0x564] sm:$0xff]
    %v871 = vld [vmem:[%s5 + $0x56c] sm:$0xff]
    %v872 = vld [vmem:[%s5 + $0x574] sm:$0xf]
    %v873 = vld [vmem:[%s5 + $0x578] sm:$0xff]
    %v874 = vld [vmem:[%s5 + $0x580] sm:$0xff]
    %v875 = vld [vmem:[%s5 + $0x588] sm:$0xff]
    %v876 = vld [vmem:[%s5 + $0x590] sm:$0xf]
    %v877 = vld [vmem:[%s5 + $0x594] sm:$0xff]
    %v878 = vld [vmem:[%s5 + $0x59c] sm:$0xff]
    %v879 = vld [vmem:[%s5 + $0x5a4] sm:$0xff]
    %v880 = vld [vmem:[%s5 + $0x5ac] sm:$0xf]
    %v881 = vld [vmem:[%s5 + $0x5b0] sm:$0xff]
    %v882 = vld [vmem:[%s5 + $0x5b8] sm:$0xff]
    %v883 = vld [vmem:[%s5 + $0x5c0] sm:$0xff]
    %v884 = vld [vmem:[%s5 + $0x5c8] sm:$0xf]
    %v885 = vld [vmem:[%s5 + $0x5cc] sm:$0xff]
    %v886 = vld [vmem:[%s5 + $0x5d4] sm:$0xff]
    %v887 = vld [vmem:[%s5 + $0x5dc] sm:$0xff]
    %v888 = vld [vmem:[%s5 + $0x5e4] sm:$0xf]
    %v889 = vld [vmem:[%s5 + $0x5e8] sm:$0xff]
    %v890 = vld [vmem:[%s5 + $0x5f0] sm:$0xff]
    %v891 = vld [vmem:[%s5 + $0x5f8] sm:$0xff]
    %v892 = vld [vmem:[%s5 + $0x600] sm:$0xf]
    %v893 = vld [vmem:[%s5 + $0x604] sm:$0xff]
    %v894 = vld [vmem:[%s5 + $0x60c] sm:$0xff]
    %v895 = vld [vmem:[%s5 + $0x614] sm:$0xff]
    %v896 = vld [vmem:[%s5 + $0x61c] sm:$0xf]
    %v897 = vld [vmem:[%s5 + $0x620] sm:$0xff]
    %v898 = vld [vmem:[%s5 + $0x628] sm:$0xff]
    %v899 = vld [vmem:[%s5 + $0x630] sm:$0xff]
    %v900 = vld [vmem:[%s5 + $0x638] sm:$0xf]
    %v901 = vld [vmem:[%s5 + $0x63c] sm:$0xff]
    %v902 = vld [vmem:[%s5 + $0x644] sm:$0xff]
    %v903 = vld [vmem:[%s5 + $0x64c] sm:$0xff]
    %v904 = vld [vmem:[%s5 + $0x654] sm:$0xf]
    %v905 = vld [vmem:[%s5 + $0x658] sm:$0xff]
    %v906 = vld [vmem:[%s5 + $0x660] sm:$0xff]
    %v907 = vld [vmem:[%s5 + $0x668] sm:$0xff]
    %v908 = vld [vmem:[%s5 + $0x670] sm:$0xf]
    %v909 = vld [vmem:[%s5 + $0x674] sm:$0xff]
    %v910 = vld [vmem:[%s5 + $0x67c] sm:$0xff]
    %v911 = vld [vmem:[%s5 + $0x684] sm:$0xff]
    %v912 = vld [vmem:[%s5 + $0x68c] sm:$0xf]
    %v913 = vld [vmem:[%s5 + $0x690] sm:$0xff]
    %v914 = vld [vmem:[%s5 + $0x698] sm:$0xff]
    %v915 = vld [vmem:[%s5 + $0x6a0] sm:$0xff]
    %v916 = vld [vmem:[%s5 + $0x6a8] sm:$0xf]
    %v917 = vld [vmem:[%s5 + $0x6ac] sm:$0xff]
    %v918 = vld [vmem:[%s5 + $0x6b4] sm:$0xff]
    %v919 = vld [vmem:[%s5 + $0x6bc] sm:$0xff]
    %v920 = vld [vmem:[%s5 + $0x6c4] sm:$0xf]
    %v921 = vld [vmem:[%s5 + $0x6c8] sm:$0xff]
    %v922 = vld [vmem:[%s5 + $0x6d0] sm:$0xff]
    %v923 = vld [vmem:[%s5 + $0x6d8] sm:$0xff]
    %v924 = vld [vmem:[%s5 + $0x6e0] sm:$0xf]
    %v925 = vld [vmem:[%s5 + $0x6e4] sm:$0xff]
    %v926 = vld [vmem:[%s5 + $0x6ec] sm:$0xff]
    %v927 = vld [vmem:[%s5 + $0x6f4] sm:$0xff]
    %v928 = vld [vmem:[%s5 + $0x6fc] sm:$0xf]
    %v929 = vld [vmem:[%s6] sm:$0x7f]
    %v931 = vperm.slane %v929, 0
    %v932 = vperm.slane %v929, 1
    %v933 = vperm.slane %v929, 2
    %v934 = vperm.slane %v929, 3
    %v935 = vperm.slane %v929, 4
    %v936 = vperm.slane %v929, 5
    %v937 = vperm.slane %v929, 6
    %v1201 = vunpack.c.l.b16 %v673
    %v1202 = vunpack.c.h.b16 %v673
    %v1203 = vunpack.c.l.b16 %v674
    %v1204 = vunpack.c.h.b16 %v674
    %v1205 = vunpack.c.l.b16 %v675
    %v1206 = vunpack.c.h.b16 %v675
    %v1207 = vunpack.c.l.b16 %v676
    %v1208 = vunpack.c.l.b16 %v677
    %v1209 = vunpack.c.h.b16 %v677
    %v1210 = vunpack.c.l.b16 %v678
    %v1211 = vunpack.c.h.b16 %v678
    %v1212 = vunpack.c.l.b16 %v679
    %v1213 = vunpack.c.h.b16 %v679
    %v1214 = vunpack.c.l.b16 %v680
    %v1215 = vunpack.c.l.b16 %v681
    %v1216 = vunpack.c.h.b16 %v681
    %v1217 = vunpack.c.l.b16 %v682
    %v1218 = vunpack.c.h.b16 %v682
    %v1219 = vunpack.c.l.b16 %v683
    %v1220 = vunpack.c.h.b16 %v683
    %v1221 = vunpack.c.l.b16 %v684
    %v1222 = vunpack.c.l.b16 %v685
    %v1223 = vunpack.c.h.b16 %v685
    %v1224 = vunpack.c.l.b16 %v686
    %v1225 = vunpack.c.h.b16 %v686
    %v1226 = vunpack.c.l.b16 %v687
    %v1227 = vunpack.c.h.b16 %v687
    %v1228 = vunpack.c.l.b16 %v688
    %v1229 = vunpack.c.l.b16 %v689
    %v1230 = vunpack.c.h.b16 %v689
    %v1231 = vunpack.c.l.b16 %v690
    %v1232 = vunpack.c.h.b16 %v690
    %v1233 = vunpack.c.l.b16 %v691
    %v1234 = vunpack.c.h.b16 %v691
    %v1235 = vunpack.c.l.b16 %v692
    %v1236 = vunpack.c.l.b16 %v693
    %v1237 = vunpack.c.h.b16 %v693
    %v1238 = vunpack.c.l.b16 %v694
    %v1239 = vunpack.c.h.b16 %v694
    %v1240 = vunpack.c.l.b16 %v695
    %v1241 = vunpack.c.h.b16 %v695
    %v1242 = vunpack.c.l.b16 %v696
    %v1243 = vunpack.c.l.b16 %v697
    %v1244 = vunpack.c.h.b16 %v697
    %v1245 = vunpack.c.l.b16 %v698
    %v1246 = vunpack.c.h.b16 %v698
    %v1247 = vunpack.c.l.b16 %v699
    %v1248 = vunpack.c.h.b16 %v699
    %v1249 = vunpack.c.l.b16 %v700
    %v1250 = vunpack.c.l.b16 %v701
    %v1251 = vunpack.c.h.b16 %v701
    %v1252 = vunpack.c.l.b16 %v702
    %v1253 = vunpack.c.h.b16 %v702
    %v1254 = vunpack.c.l.b16 %v703
    %v1255 = vunpack.c.h.b16 %v703
    %v1256 = vunpack.c.l.b16 %v704
    %v1257 = vunpack.c.l.b16 %v705
    %v1258 = vunpack.c.h.b16 %v705
    %v1259 = vunpack.c.l.b16 %v706
    %v1260 = vunpack.c.h.b16 %v706
    %v1261 = vunpack.c.l.b16 %v707
    %v1262 = vunpack.c.h.b16 %v707
    %v1263 = vunpack.c.l.b16 %v708
    %v1264 = vunpack.c.l.b16 %v709
    %v1265 = vunpack.c.h.b16 %v709
    %v1266 = vunpack.c.l.b16 %v710
    %v1267 = vunpack.c.h.b16 %v710
    %v1268 = vunpack.c.l.b16 %v711
    %v1269 = vunpack.c.h.b16 %v711
    %v1270 = vunpack.c.l.b16 %v712
    %v1271 = vunpack.c.l.b16 %v713
    %v1272 = vunpack.c.h.b16 %v713
    %v1273 = vunpack.c.l.b16 %v714
    %v1274 = vunpack.c.h.b16 %v714
    %v1275 = vunpack.c.l.b16 %v715
    %v1276 = vunpack.c.h.b16 %v715
    %v1277 = vunpack.c.l.b16 %v716
    %v1278 = vunpack.c.l.b16 %v717
    %v1279 = vunpack.c.h.b16 %v717
    %v1280 = vunpack.c.l.b16 %v718
    %v1281 = vunpack.c.h.b16 %v718
    %v1282 = vunpack.c.l.b16 %v719
    %v1283 = vunpack.c.h.b16 %v719
    %v1284 = vunpack.c.l.b16 %v720
    %v1285 = vunpack.c.l.b16 %v721
    %v1286 = vunpack.c.h.b16 %v721
    %v1287 = vunpack.c.l.b16 %v722
    %v1288 = vunpack.c.h.b16 %v722
    %v1289 = vunpack.c.l.b16 %v723
    %v1290 = vunpack.c.h.b16 %v723
    %v1291 = vunpack.c.l.b16 %v724
    %v1292 = vunpack.c.l.b16 %v725
    %v1293 = vunpack.c.h.b16 %v725
    %v1294 = vunpack.c.l.b16 %v726
    %v1295 = vunpack.c.h.b16 %v726
    %v1296 = vunpack.c.l.b16 %v727
    %v1297 = vunpack.c.h.b16 %v727
    %v1298 = vunpack.c.l.b16 %v728
    %v1299 = vunpack.c.l.b16 %v729
    %v1300 = vunpack.c.h.b16 %v729
    %v1301 = vunpack.c.l.b16 %v730
    %v1302 = vunpack.c.h.b16 %v730
    %v1303 = vunpack.c.l.b16 %v731
    %v1304 = vunpack.c.h.b16 %v731
    %v1305 = vunpack.c.l.b16 %v732
    %v1306 = vunpack.c.l.b16 %v733
    %v1307 = vunpack.c.h.b16 %v733
    %v1308 = vunpack.c.l.b16 %v734
    %v1309 = vunpack.c.h.b16 %v734
    %v1310 = vunpack.c.l.b16 %v735
    %v1311 = vunpack.c.h.b16 %v735
    %v1312 = vunpack.c.l.b16 %v736
    %v1313 = vunpack.c.l.b16 %v737
    %v1314 = vunpack.c.h.b16 %v737
    %v1315 = vunpack.c.l.b16 %v738
    %v1316 = vunpack.c.h.b16 %v738
    %v1317 = vunpack.c.l.b16 %v739
    %v1318 = vunpack.c.h.b16 %v739
    %v1319 = vunpack.c.l.b16 %v740
    %v1320 = vunpack.c.l.b16 %v741
    %v1321 = vunpack.c.h.b16 %v741
    %v1322 = vunpack.c.l.b16 %v742
    %v1323 = vunpack.c.h.b16 %v742
    %v1324 = vunpack.c.l.b16 %v743
    %v1325 = vunpack.c.h.b16 %v743
    %v1326 = vunpack.c.l.b16 %v744
    %v1327 = vunpack.c.l.b16 %v745
    %v1328 = vunpack.c.h.b16 %v745
    %v1329 = vunpack.c.l.b16 %v746
    %v1330 = vunpack.c.h.b16 %v746
    %v1331 = vunpack.c.l.b16 %v747
    %v1332 = vunpack.c.h.b16 %v747
    %v1333 = vunpack.c.l.b16 %v748
    %v1334 = vunpack.c.l.b16 %v749
    %v1335 = vunpack.c.h.b16 %v749
    %v1336 = vunpack.c.l.b16 %v750
    %v1337 = vunpack.c.h.b16 %v750
    %v1338 = vunpack.c.l.b16 %v751
    %v1339 = vunpack.c.h.b16 %v751
    %v1340 = vunpack.c.l.b16 %v752
    %v1341 = vunpack.c.l.b16 %v753
    %v1342 = vunpack.c.h.b16 %v753
    %v1343 = vunpack.c.l.b16 %v754
    %v1344 = vunpack.c.h.b16 %v754
    %v1345 = vunpack.c.l.b16 %v755
    %v1346 = vunpack.c.h.b16 %v755
    %v1347 = vunpack.c.l.b16 %v756
    %v1348 = vunpack.c.l.b16 %v757
    %v1349 = vunpack.c.h.b16 %v757
    %v1350 = vunpack.c.l.b16 %v758
    %v1351 = vunpack.c.h.b16 %v758
    %v1352 = vunpack.c.l.b16 %v759
    %v1353 = vunpack.c.h.b16 %v759
    %v1354 = vunpack.c.l.b16 %v760
    %v1355 = vunpack.c.l.b16 %v761
    %v1356 = vunpack.c.h.b16 %v761
    %v1357 = vunpack.c.l.b16 %v762
    %v1358 = vunpack.c.h.b16 %v762
    %v1359 = vunpack.c.l.b16 %v763
    %v1360 = vunpack.c.h.b16 %v763
    %v1361 = vunpack.c.l.b16 %v764
    %v1362 = vunpack.c.l.b16 %v765
    %v1363 = vunpack.c.h.b16 %v765
    %v1364 = vunpack.c.l.b16 %v766
    %v1365 = vunpack.c.h.b16 %v766
    %v1366 = vunpack.c.l.b16 %v767
    %v1367 = vunpack.c.h.b16 %v767
    %v1368 = vunpack.c.l.b16 %v768
    %v1369 = vunpack.c.l.b16 %v769
    %v1370 = vunpack.c.h.b16 %v769
    %v1371 = vunpack.c.l.b16 %v770
    %v1372 = vunpack.c.h.b16 %v770
    %v1373 = vunpack.c.l.b16 %v771
    %v1374 = vunpack.c.h.b16 %v771
    %v1375 = vunpack.c.l.b16 %v772
    %v1376 = vunpack.c.l.b16 %v773
    %v1377 = vunpack.c.h.b16 %v773
    %v1378 = vunpack.c.l.b16 %v774
    %v1379 = vunpack.c.h.b16 %v774
    %v1380 = vunpack.c.l.b16 %v775
    %v1381 = vunpack.c.h.b16 %v775
    %v1382 = vunpack.c.l.b16 %v776
    %v1383 = vunpack.c.l.b16 %v777
    %v1384 = vunpack.c.h.b16 %v777
    %v1385 = vunpack.c.l.b16 %v778
    %v1386 = vunpack.c.h.b16 %v778
    %v1387 = vunpack.c.l.b16 %v779
    %v1388 = vunpack.c.h.b16 %v779
    %v1389 = vunpack.c.l.b16 %v780
    %v1390 = vunpack.c.l.b16 %v781
    %v1391 = vunpack.c.h.b16 %v781
    %v1392 = vunpack.c.l.b16 %v782
    %v1393 = vunpack.c.h.b16 %v782
    %v1394 = vunpack.c.l.b16 %v783
    %v1395 = vunpack.c.h.b16 %v783
    %v1396 = vunpack.c.l.b16 %v784
    %v1397 = vunpack.c.l.b16 %v785
    %v1398 = vunpack.c.h.b16 %v785
    %v1399 = vunpack.c.l.b16 %v786
    %v1400 = vunpack.c.h.b16 %v786
    %v1401 = vunpack.c.l.b16 %v787
    %v1402 = vunpack.c.h.b16 %v787
    %v1403 = vunpack.c.l.b16 %v788
    %v1404 = vunpack.c.l.b16 %v789
    %v1405 = vunpack.c.h.b16 %v789
    %v1406 = vunpack.c.l.b16 %v790
    %v1407 = vunpack.c.h.b16 %v790
    %v1408 = vunpack.c.l.b16 %v791
    %v1409 = vunpack.c.h.b16 %v791
    %v1410 = vunpack.c.l.b16 %v792
    %v1411 = vunpack.c.l.b16 %v793
    %v1412 = vunpack.c.h.b16 %v793
    %v1413 = vunpack.c.l.b16 %v794
    %v1414 = vunpack.c.h.b16 %v794
    %v1415 = vunpack.c.l.b16 %v795
    %v1416 = vunpack.c.h.b16 %v795
    %v1417 = vunpack.c.l.b16 %v796
    %v1418 = vunpack.c.l.b16 %v797
    %v1419 = vunpack.c.h.b16 %v797
    %v1420 = vunpack.c.l.b16 %v798
    %v1421 = vunpack.c.h.b16 %v798
    %v1422 = vunpack.c.l.b16 %v799
    %v1423 = vunpack.c.h.b16 %v799
    %v1424 = vunpack.c.l.b16 %v800
    %v1425 = vunpack.c.l.b16 %v801
    %v1426 = vunpack.c.h.b16 %v801
    %v1427 = vunpack.c.l.b16 %v802
    %v1428 = vunpack.c.h.b16 %v802
    %v1429 = vunpack.c.l.b16 %v803
    %v1430 = vunpack.c.h.b16 %v803
    %v1431 = vunpack.c.l.b16 %v804
    %v1432 = vunpack.c.l.b16 %v805
    %v1433 = vunpack.c.h.b16 %v805
    %v1434 = vunpack.c.l.b16 %v806
    %v1435 = vunpack.c.h.b16 %v806
    %v1436 = vunpack.c.l.b16 %v807
    %v1437 = vunpack.c.h.b16 %v807
    %v1438 = vunpack.c.l.b16 %v808
    %v1439 = vunpack.c.l.b16 %v809
    %v1440 = vunpack.c.h.b16 %v809
    %v1441 = vunpack.c.l.b16 %v810
    %v1442 = vunpack.c.h.b16 %v810
    %v1443 = vunpack.c.l.b16 %v811
    %v1444 = vunpack.c.h.b16 %v811
    %v1445 = vunpack.c.l.b16 %v812
    %v1446 = vunpack.c.l.b16 %v813
    %v1447 = vunpack.c.h.b16 %v813
    %v1448 = vunpack.c.l.b16 %v814
    %v1449 = vunpack.c.h.b16 %v814
    %v1450 = vunpack.c.l.b16 %v815
    %v1451 = vunpack.c.h.b16 %v815
    %v1452 = vunpack.c.l.b16 %v816
    %v1453 = vunpack.c.l.b16 %v817
    %v1454 = vunpack.c.h.b16 %v817
    %v1455 = vunpack.c.l.b16 %v818
    %v1456 = vunpack.c.h.b16 %v818
    %v1457 = vunpack.c.l.b16 %v819
    %v1458 = vunpack.c.h.b16 %v819
    %v1459 = vunpack.c.l.b16 %v820
    %v1460 = vunpack.c.l.b16 %v821
    %v1461 = vunpack.c.h.b16 %v821
    %v1462 = vunpack.c.l.b16 %v822
    %v1463 = vunpack.c.h.b16 %v822
    %v1464 = vunpack.c.l.b16 %v823
    %v1465 = vunpack.c.h.b16 %v823
    %v1466 = vunpack.c.l.b16 %v824
    %v1467 = vunpack.c.l.b16 %v825
    %v1468 = vunpack.c.h.b16 %v825
    %v1469 = vunpack.c.l.b16 %v826
    %v1470 = vunpack.c.h.b16 %v826
    %v1471 = vunpack.c.l.b16 %v827
    %v1472 = vunpack.c.h.b16 %v827
    %v1473 = vunpack.c.l.b16 %v828
    %v1474 = vunpack.c.l.b16 %v829
    %v1475 = vunpack.c.h.b16 %v829
    %v1476 = vunpack.c.l.b16 %v830
    %v1477 = vunpack.c.h.b16 %v830
    %v1478 = vunpack.c.l.b16 %v831
    %v1479 = vunpack.c.h.b16 %v831
    %v1480 = vunpack.c.l.b16 %v832
    %v1481 = vunpack.c.l.b16 %v833
    %v1482 = vunpack.c.h.b16 %v833
    %v1483 = vunpack.c.l.b16 %v834
    %v1484 = vunpack.c.h.b16 %v834
    %v1485 = vunpack.c.l.b16 %v835
    %v1486 = vunpack.c.h.b16 %v835
    %v1487 = vunpack.c.l.b16 %v836
    %v1488 = vunpack.c.l.b16 %v837
    %v1489 = vunpack.c.h.b16 %v837
    %v1490 = vunpack.c.l.b16 %v838
    %v1491 = vunpack.c.h.b16 %v838
    %v1492 = vunpack.c.l.b16 %v839
    %v1493 = vunpack.c.h.b16 %v839
    %v1494 = vunpack.c.l.b16 %v840
    %v1495 = vunpack.c.l.b16 %v841
    %v1496 = vunpack.c.h.b16 %v841
    %v1497 = vunpack.c.l.b16 %v842
    %v1498 = vunpack.c.h.b16 %v842
    %v1499 = vunpack.c.l.b16 %v843
    %v1500 = vunpack.c.h.b16 %v843
    %v1501 = vunpack.c.l.b16 %v844
    %v1502 = vunpack.c.l.b16 %v845
    %v1503 = vunpack.c.h.b16 %v845
    %v1504 = vunpack.c.l.b16 %v846
    %v1505 = vunpack.c.h.b16 %v846
    %v1506 = vunpack.c.l.b16 %v847
    %v1507 = vunpack.c.h.b16 %v847
    %v1508 = vunpack.c.l.b16 %v848
    %v1509 = vunpack.c.l.b16 %v849
    %v1510 = vunpack.c.h.b16 %v849
    %v1511 = vunpack.c.l.b16 %v850
    %v1512 = vunpack.c.h.b16 %v850
    %v1513 = vunpack.c.l.b16 %v851
    %v1514 = vunpack.c.h.b16 %v851
    %v1515 = vunpack.c.l.b16 %v852
    %v1516 = vunpack.c.l.b16 %v853
    %v1517 = vunpack.c.h.b16 %v853
    %v1518 = vunpack.c.l.b16 %v854
    %v1519 = vunpack.c.h.b16 %v854
    %v1520 = vunpack.c.l.b16 %v855
    %v1521 = vunpack.c.h.b16 %v855
    %v1522 = vunpack.c.l.b16 %v856
    %v1523 = vunpack.c.l.b16 %v857
    %v1524 = vunpack.c.h.b16 %v857
    %v1525 = vunpack.c.l.b16 %v858
    %v1526 = vunpack.c.h.b16 %v858
    %v1527 = vunpack.c.l.b16 %v859
    %v1528 = vunpack.c.h.b16 %v859
    %v1529 = vunpack.c.l.b16 %v860
    %v1530 = vunpack.c.l.b16 %v861
    %v1531 = vunpack.c.h.b16 %v861
    %v1532 = vunpack.c.l.b16 %v862
    %v1533 = vunpack.c.h.b16 %v862
    %v1534 = vunpack.c.l.b16 %v863
    %v1535 = vunpack.c.h.b16 %v863
    %v1536 = vunpack.c.l.b16 %v864
    %v1537 = vunpack.c.l.b16 %v865
    %v1538 = vunpack.c.h.b16 %v865
    %v1539 = vunpack.c.l.b16 %v866
    %v1540 = vunpack.c.h.b16 %v866
    %v1541 = vunpack.c.l.b16 %v867
    %v1542 = vunpack.c.h.b16 %v867
    %v1543 = vunpack.c.l.b16 %v868
    %v1544 = vunpack.c.l.b16 %v869
    %v1545 = vunpack.c.h.b16 %v869
    %v1546 = vunpack.c.l.b16 %v870
    %v1547 = vunpack.c.h.b16 %v870
    %v1548 = vunpack.c.l.b16 %v871
    %v1549 = vunpack.c.h.b16 %v871
    %v1550 = vunpack.c.l.b16 %v872
    %v1551 = vunpack.c.l.b16 %v873
    %v1552 = vunpack.c.h.b16 %v873
    %v1553 = vunpack.c.l.b16 %v874
    %v1554 = vunpack.c.h.b16 %v874
    %v1555 = vunpack.c.l.b16 %v875
    %v1556 = vunpack.c.h.b16 %v875
    %v1557 = vunpack.c.l.b16 %v876
    %v1558 = vunpack.c.l.b16 %v877
    %v1559 = vunpack.c.h.b16 %v877
    %v1560 = vunpack.c.l.b16 %v878
    %v1561 = vunpack.c.h.b16 %v878
    %v1562 = vunpack.c.l.b16 %v879
    %v1563 = vunpack.c.h.b16 %v879
    %v1564 = vunpack.c.l.b16 %v880
    %v1565 = vunpack.c.l.b16 %v881
    %v1566 = vunpack.c.h.b16 %v881
    %v1567 = vunpack.c.l.b16 %v882
    %v1568 = vunpack.c.h.b16 %v882
    %v1569 = vunpack.c.l.b16 %v883
    %v1570 = vunpack.c.h.b16 %v883
    %v1571 = vunpack.c.l.b16 %v884
    %v1572 = vunpack.c.l.b16 %v885
    %v1573 = vunpack.c.h.b16 %v885
    %v1574 = vunpack.c.l.b16 %v886
    %v1575 = vunpack.c.h.b16 %v886
    %v1576 = vunpack.c.l.b16 %v887
    %v1577 = vunpack.c.h.b16 %v887
    %v1578 = vunpack.c.l.b16 %v888
    %v1579 = vunpack.c.l.b16 %v889
    %v1580 = vunpack.c.h.b16 %v889
    %v1581 = vunpack.c.l.b16 %v890
    %v1582 = vunpack.c.h.b16 %v890
    %v1583 = vunpack.c.l.b16 %v891
    %v1584 = vunpack.c.h.b16 %v891
    %v1585 = vunpack.c.l.b16 %v892
    %v1586 = vunpack.c.l.b16 %v893
    %v1587 = vunpack.c.h.b16 %v893
    %v1588 = vunpack.c.l.b16 %v894
    %v1589 = vunpack.c.h.b16 %v894
    %v1590 = vunpack.c.l.b16 %v895
    %v1591 = vunpack.c.h.b16 %v895
    %v1592 = vunpack.c.l.b16 %v896
    %v1593 = vunpack.c.l.b16 %v897
    %v1594 = vunpack.c.h.b16 %v897
    %v1595 = vunpack.c.l.b16 %v898
    %v1596 = vunpack.c.h.b16 %v898
    %v1597 = vunpack.c.l.b16 %v899
    %v1598 = vunpack.c.h.b16 %v899
    %v1599 = vunpack.c.l.b16 %v900
    %v1600 = vunpack.c.l.b16 %v901
    %v1601 = vunpack.c.h.b16 %v901
    %v1602 = vunpack.c.l.b16 %v902
    %v1603 = vunpack.c.h.b16 %v902
    %v1604 = vunpack.c.l.b16 %v903
    %v1605 = vunpack.c.h.b16 %v903
    %v1606 = vunpack.c.l.b16 %v904
    %v1607 = vunpack.c.l.b16 %v905
    %v1608 = vunpack.c.h.b16 %v905
    %v1609 = vunpack.c.l.b16 %v906
    %v1610 = vunpack.c.h.b16 %v906
    %v1611 = vunpack.c.l.b16 %v907
    %v1612 = vunpack.c.h.b16 %v907
    %v1613 = vunpack.c.l.b16 %v908
    %v1614 = vunpack.c.l.b16 %v909
    %v1615 = vunpack.c.h.b16 %v909
    %v1616 = vunpack.c.l.b16 %v910
    %v1617 = vunpack.c.h.b16 %v910
    %v1618 = vunpack.c.l.b16 %v911
    %v1619 = vunpack.c.h.b16 %v911
    %v1620 = vunpack.c.l.b16 %v912
    %v1621 = vunpack.c.l.b16 %v913
    %v1622 = vunpack.c.h.b16 %v913
    %v1623 = vunpack.c.l.b16 %v914
    %v1624 = vunpack.c.h.b16 %v914
    %v1625 = vunpack.c.l.b16 %v915
    %v1626 = vunpack.c.h.b16 %v915
    %v1627 = vunpack.c.l.b16 %v916
    %v1628 = vunpack.c.l.b16 %v917
    %v1629 = vunpack.c.h.b16 %v917
    %v1630 = vunpack.c.l.b16 %v918
    %v1631 = vunpack.c.h.b16 %v918
    %v1632 = vunpack.c.l.b16 %v919
    %v1633 = vunpack.c.h.b16 %v919
    %v1634 = vunpack.c.l.b16 %v920
    %v1635 = vunpack.c.l.b16 %v921
    %v1636 = vunpack.c.h.b16 %v921
    %v1637 = vunpack.c.l.b16 %v922
    %v1638 = vunpack.c.h.b16 %v922
    %v1639 = vunpack.c.l.b16 %v923
    %v1640 = vunpack.c.h.b16 %v923
    %v1641 = vunpack.c.l.b16 %v924
    %v1642 = vunpack.c.l.b16 %v925
    %v1643 = vunpack.c.h.b16 %v925
    %v1644 = vunpack.c.l.b16 %v926
    %v1645 = vunpack.c.h.b16 %v926
    %v1646 = vunpack.c.l.b16 %v927
    %v1647 = vunpack.c.h.b16 %v927
    %v1648 = vunpack.c.l.b16 %v928
    %v1649 = vpack.c.b16 %v1208, %v1201
    %v1650 = vpack.c.b16 %v1209, %v1202
    %v1651 = vpack.c.b16 %v1210, %v1203
    %v1652 = vpack.c.b16 %v1211, %v1204
    %v1653 = vpack.c.b16 %v1212, %v1205
    %v1654 = vpack.c.b16 %v1213, %v1206
    %v1655 = vpack.c.b16 %v1214, %v1207
    %v1656 = vpack.c.b16 %v1222, %v1215
    %v1657 = vpack.c.b16 %v1223, %v1216
    %v1658 = vpack.c.b16 %v1224, %v1217
    %v1659 = vpack.c.b16 %v1225, %v1218
    %v1660 = vpack.c.b16 %v1226, %v1219
    %v1661 = vpack.c.b16 %v1227, %v1220
    %v1662 = vpack.c.b16 %v1228, %v1221
    %v1663 = vpack.c.b16 %v1236, %v1229
    %v1664 = vpack.c.b16 %v1237, %v1230
    %v1665 = vpack.c.b16 %v1238, %v1231
    %v1666 = vpack.c.b16 %v1239, %v1232
    %v1667 = vpack.c.b16 %v1240, %v1233
    %v1668 = vpack.c.b16 %v1241, %v1234
    %v1669 = vpack.c.b16 %v1242, %v1235
    %v1670 = vpack.c.b16 %v1250, %v1243
    %v1671 = vpack.c.b16 %v1251, %v1244
    %v1672 = vpack.c.b16 %v1252, %v1245
    %v1673 = vpack.c.b16 %v1253, %v1246
    %v1674 = vpack.c.b16 %v1254, %v1247
    %v1675 = vpack.c.b16 %v1255, %v1248
    %v1676 = vpack.c.b16 %v1256, %v1249
    %v1677 = vpack.c.b16 %v1264, %v1257
    %v1678 = vpack.c.b16 %v1265, %v1258
    %v1679 = vpack.c.b16 %v1266, %v1259
    %v1680 = vpack.c.b16 %v1267, %v1260
    %v1681 = vpack.c.b16 %v1268, %v1261
    %v1682 = vpack.c.b16 %v1269, %v1262
    %v1683 = vpack.c.b16 %v1270, %v1263
    %v1684 = vpack.c.b16 %v1278, %v1271
    %v1685 = vpack.c.b16 %v1279, %v1272
    %v1686 = vpack.c.b16 %v1280, %v1273
    %v1687 = vpack.c.b16 %v1281, %v1274
    %v1688 = vpack.c.b16 %v1282, %v1275
    %v1689 = vpack.c.b16 %v1283, %v1276
    %v1690 = vpack.c.b16 %v1284, %v1277
    %v1691 = vpack.c.b16 %v1292, %v1285
    %v1692 = vpack.c.b16 %v1293, %v1286
    %v1693 = vpack.c.b16 %v1294, %v1287
    %v1694 = vpack.c.b16 %v1295, %v1288
    %v1695 = vpack.c.b16 %v1296, %v1289
    %v1696 = vpack.c.b16 %v1297, %v1290
    %v1697 = vpack.c.b16 %v1298, %v1291
    %v1698 = vpack.c.b16 %v1306, %v1299
    %v1699 = vpack.c.b16 %v1307, %v1300
    %v1700 = vpack.c.b16 %v1308, %v1301
    %v1701 = vpack.c.b16 %v1309, %v1302
    %v1702 = vpack.c.b16 %v1310, %v1303
    %v1703 = vpack.c.b16 %v1311, %v1304
    %v1704 = vpack.c.b16 %v1312, %v1305
    %v1705 = vpack.c.b16 %v1320, %v1313
    %v1706 = vpack.c.b16 %v1321, %v1314
    %v1707 = vpack.c.b16 %v1322, %v1315
    %v1708 = vpack.c.b16 %v1323, %v1316
    %v1709 = vpack.c.b16 %v1324, %v1317
    %v1710 = vpack.c.b16 %v1325, %v1318
    %v1711 = vpack.c.b16 %v1326, %v1319
    %v1712 = vpack.c.b16 %v1334, %v1327
    %v1713 = vpack.c.b16 %v1335, %v1328
    %v1714 = vpack.c.b16 %v1336, %v1329
    %v1715 = vpack.c.b16 %v1337, %v1330
    %v1716 = vpack.c.b16 %v1338, %v1331
    %v1717 = vpack.c.b16 %v1339, %v1332
    %v1718 = vpack.c.b16 %v1340, %v1333
    %v1719 = vpack.c.b16 %v1348, %v1341
    %v1720 = vpack.c.b16 %v1349, %v1342
    %v1721 = vpack.c.b16 %v1350, %v1343
    %v1722 = vpack.c.b16 %v1351, %v1344
    %v1723 = vpack.c.b16 %v1352, %v1345
    %v1724 = vpack.c.b16 %v1353, %v1346
    %v1725 = vpack.c.b16 %v1354, %v1347
    %v1726 = vpack.c.b16 %v1362, %v1355
    %v1727 = vpack.c.b16 %v1363, %v1356
    %v1728 = vpack.c.b16 %v1364, %v1357
    %v1729 = vpack.c.b16 %v1365, %v1358
    %v1730 = vpack.c.b16 %v1366, %v1359
    %v1731 = vpack.c.b16 %v1367, %v1360
    %v1732 = vpack.c.b16 %v1368, %v1361
    %v1733 = vpack.c.b16 %v1376, %v1369
    %v1734 = vpack.c.b16 %v1377, %v1370
    %v1735 = vpack.c.b16 %v1378, %v1371
    %v1736 = vpack.c.b16 %v1379, %v1372
    %v1737 = vpack.c.b16 %v1380, %v1373
    %v1738 = vpack.c.b16 %v1381, %v1374
    %v1739 = vpack.c.b16 %v1382, %v1375
    %v1740 = vpack.c.b16 %v1390, %v1383
    %v1741 = vpack.c.b16 %v1391, %v1384
    %v1742 = vpack.c.b16 %v1392, %v1385
    %v1743 = vpack.c.b16 %v1393, %v1386
    %v1744 = vpack.c.b16 %v1394, %v1387
    %v1745 = vpack.c.b16 %v1395, %v1388
    %v1746 = vpack.c.b16 %v1396, %v1389
    %v1747 = vpack.c.b16 %v1404, %v1397
    %v1748 = vpack.c.b16 %v1405, %v1398
    %v1749 = vpack.c.b16 %v1406, %v1399
    %v1750 = vpack.c.b16 %v1407, %v1400
    %v1751 = vpack.c.b16 %v1408, %v1401
    %v1752 = vpack.c.b16 %v1409, %v1402
    %v1753 = vpack.c.b16 %v1410, %v1403
    %v1754 = vpack.c.b16 %v1418, %v1411
    %v1755 = vpack.c.b16 %v1419, %v1412
    %v1756 = vpack.c.b16 %v1420, %v1413
    %v1757 = vpack.c.b16 %v1421, %v1414
    %v1758 = vpack.c.b16 %v1422, %v1415
    %v1759 = vpack.c.b16 %v1423, %v1416
    %v1760 = vpack.c.b16 %v1424, %v1417
    %v1761 = vpack.c.b16 %v1432, %v1425
    %v1762 = vpack.c.b16 %v1433, %v1426
    %v1763 = vpack.c.b16 %v1434, %v1427
    %v1764 = vpack.c.b16 %v1435, %v1428
    %v1765 = vpack.c.b16 %v1436, %v1429
    %v1766 = vpack.c.b16 %v1437, %v1430
    %v1767 = vpack.c.b16 %v1438, %v1431
    %v1768 = vpack.c.b16 %v1446, %v1439
    %v1769 = vpack.c.b16 %v1447, %v1440
    %v1770 = vpack.c.b16 %v1448, %v1441
    %v1771 = vpack.c.b16 %v1449, %v1442
    %v1772 = vpack.c.b16 %v1450, %v1443
    %v1773 = vpack.c.b16 %v1451, %v1444
    %v1774 = vpack.c.b16 %v1452, %v1445
    %v1775 = vpack.c.b16 %v1460, %v1453
    %v1776 = vpack.c.b16 %v1461, %v1454
    %v1777 = vpack.c.b16 %v1462, %v1455
    %v1778 = vpack.c.b16 %v1463, %v1456
    %v1779 = vpack.c.b16 %v1464, %v1457
    %v1780 = vpack.c.b16 %v1465, %v1458
    %v1781 = vpack.c.b16 %v1466, %v1459
    %v1782 = vpack.c.b16 %v1474, %v1467
    %v1783 = vpack.c.b16 %v1475, %v1468
    %v1784 = vpack.c.b16 %v1476, %v1469
    %v1785 = vpack.c.b16 %v1477, %v1470
    %v1786 = vpack.c.b16 %v1478, %v1471
    %v1787 = vpack.c.b16 %v1479, %v1472
    %v1788 = vpack.c.b16 %v1480, %v1473
    %v1789 = vpack.c.b16 %v1488, %v1481
    %v1790 = vpack.c.b16 %v1489, %v1482
    %v1791 = vpack.c.b16 %v1490, %v1483
    %v1792 = vpack.c.b16 %v1491, %v1484
    %v1793 = vpack.c.b16 %v1492, %v1485
    %v1794 = vpack.c.b16 %v1493, %v1486
    %v1795 = vpack.c.b16 %v1494, %v1487
    %v1796 = vpack.c.b16 %v1502, %v1495
    %v1797 = vpack.c.b16 %v1503, %v1496
    %v1798 = vpack.c.b16 %v1504, %v1497
    %v1799 = vpack.c.b16 %v1505, %v1498
    %v1800 = vpack.c.b16 %v1506, %v1499
    %v1801 = vpack.c.b16 %v1507, %v1500
    %v1802 = vpack.c.b16 %v1508, %v1501
    %v1803 = vpack.c.b16 %v1516, %v1509
    %v1804 = vpack.c.b16 %v1517, %v1510
    %v1805 = vpack.c.b16 %v1518, %v1511
    %v1806 = vpack.c.b16 %v1519, %v1512
    %v1807 = vpack.c.b16 %v1520, %v1513
    %v1808 = vpack.c.b16 %v1521, %v1514
    %v1809 = vpack.c.b16 %v1522, %v1515
    %v1810 = vpack.c.b16 %v1530, %v1523
    %v1811 = vpack.c.b16 %v1531, %v1524
    %v1812 = vpack.c.b16 %v1532, %v1525
    %v1813 = vpack.c.b16 %v1533, %v1526
    %v1814 = vpack.c.b16 %v1534, %v1527
    %v1815 = vpack.c.b16 %v1535, %v1528
    %v1816 = vpack.c.b16 %v1536, %v1529
    %v1817 = vpack.c.b16 %v1544, %v1537
    %v1818 = vpack.c.b16 %v1545, %v1538
    %v1819 = vpack.c.b16 %v1546, %v1539
    %v1820 = vpack.c.b16 %v1547, %v1540
    %v1821 = vpack.c.b16 %v1548, %v1541
    %v1822 = vpack.c.b16 %v1549, %v1542
    %v1823 = vpack.c.b16 %v1550, %v1543
    %v1824 = vpack.c.b16 %v1558, %v1551
    %v1825 = vpack.c.b16 %v1559, %v1552
    %v1826 = vpack.c.b16 %v1560, %v1553
    %v1827 = vpack.c.b16 %v1561, %v1554
    %v1828 = vpack.c.b16 %v1562, %v1555
    %v1829 = vpack.c.b16 %v1563, %v1556
    %v1830 = vpack.c.b16 %v1564, %v1557
    %v1831 = vpack.c.b16 %v1572, %v1565
    %v1832 = vpack.c.b16 %v1573, %v1566
    %v1833 = vpack.c.b16 %v1574, %v1567
    %v1834 = vpack.c.b16 %v1575, %v1568
    %v1835 = vpack.c.b16 %v1576, %v1569
    %v1836 = vpack.c.b16 %v1577, %v1570
    %v1837 = vpack.c.b16 %v1578, %v1571
    %v1838 = vpack.c.b16 %v1586, %v1579
    %v1839 = vpack.c.b16 %v1587, %v1580
    %v1840 = vpack.c.b16 %v1588, %v1581
    %v1841 = vpack.c.b16 %v1589, %v1582
    %v1842 = vpack.c.b16 %v1590, %v1583
    %v1843 = vpack.c.b16 %v1591, %v1584
    %v1844 = vpack.c.b16 %v1592, %v1585
    %v1845 = vpack.c.b16 %v1600, %v1593
    %v1846 = vpack.c.b16 %v1601, %v1594
    %v1847 = vpack.c.b16 %v1602, %v1595
    %v1848 = vpack.c.b16 %v1603, %v1596
    %v1849 = vpack.c.b16 %v1604, %v1597
    %v1850 = vpack.c.b16 %v1605, %v1598
    %v1851 = vpack.c.b16 %v1606, %v1599
    %v1852 = vpack.c.b16 %v1614, %v1607
    %v1853 = vpack.c.b16 %v1615, %v1608
    %v1854 = vpack.c.b16 %v1616, %v1609
    %v1855 = vpack.c.b16 %v1617, %v1610
    %v1856 = vpack.c.b16 %v1618, %v1611
    %v1857 = vpack.c.b16 %v1619, %v1612
    %v1858 = vpack.c.b16 %v1620, %v1613
    %v1859 = vpack.c.b16 %v1628, %v1621
    %v1860 = vpack.c.b16 %v1629, %v1622
    %v1861 = vpack.c.b16 %v1630, %v1623
    %v1862 = vpack.c.b16 %v1631, %v1624
    %v1863 = vpack.c.b16 %v1632, %v1625
    %v1864 = vpack.c.b16 %v1633, %v1626
    %v1865 = vpack.c.b16 %v1634, %v1627
    %v1866 = vpack.c.b16 %v1642, %v1635
    %v1867 = vpack.c.b16 %v1643, %v1636
    %v1868 = vpack.c.b16 %v1644, %v1637
    %v1869 = vpack.c.b16 %v1645, %v1638
    %v1870 = vpack.c.b16 %v1646, %v1639
    %v1871 = vpack.c.b16 %v1647, %v1640
    %v1872 = vpack.c.b16 %v1648, %v1641
    %2097 = vmatpush.bf16.msra.mxu0 %v1698
    %2098 = vmatpush.bf16.msra.mxu0 %v1691
    %2099 = vmatpush.bf16.msra.mxu0 %v1684
    %2100 = vmatpush.bf16.msra.mxu0 %v1677
    %2101 = vmatpush.bf16.msra.mxu0 %v1670
    %2102 = vmatpush.bf16.msra.mxu0 %v1663
    %2103 = vmatpush.bf16.msra.mxu0 %v1656
    %2104 = vmatpush.bf16.msra.mxu0 %v1649
    %2105 = vmatmul.bf16.gmra.mxu0 %v669
    %v2106 = vpop.f32.mrf.mxu0
    %v2107 = vadd.f32 %v931, %v2106
    %v2108 = vpop.f32.mrf.mxu0
    %2109 = vdwg.mxu0
    %2110 = vmatpush.bf16.msra.mxu0 %v1754
    %2111 = vmatpush.bf16.msra.mxu0 %v1747
    %2112 = vmatpush.bf16.msra.mxu0 %v1740
    %2113 = vmatpush.bf16.msra.mxu0 %v1733
    %2114 = vmatpush.bf16.msra.mxu0 %v1726
    %2115 = vmatpush.bf16.msra.mxu0 %v1719
    %2116 = vmatpush.bf16.msra.mxu0 %v1712
    %2117 = vmatpush.bf16.msra.mxu0 %v1705
    %2118 = vmatmul.bf16.gmra.mxu0 %v670
    %v2119 = vpop.f32.mrf.mxu0
    %v2120 = vadd.f32 %v2107, %v2119
    %v2121 = vpop.f32.mrf.mxu0
    %2122 = vdwg.mxu0
    %2123 = vmatpush.bf16.msra.mxu0 %v1810
    %2124 = vmatpush.bf16.msra.mxu0 %v1803
    %2125 = vmatpush.bf16.msra.mxu0 %v1796
    %2126 = vmatpush.bf16.msra.mxu0 %v1789
    %2127 = vmatpush.bf16.msra.mxu0 %v1782
    %2128 = vmatpush.bf16.msra.mxu0 %v1775
    %2129 = vmatpush.bf16.msra.mxu0 %v1768
    %2130 = vmatpush.bf16.msra.mxu0 %v1761
    %2131 = vmatmul.bf16.gmra.mxu0 %v671
    %v2132 = vpop.f32.mrf.mxu0
    %v2133 = vadd.f32 %v2120, %v2132
    %v2134 = vpop.f32.mrf.mxu0
    %2135 = vdwg.mxu0
    %2136 = vmatpush.bf16.msra.mxu0 %v1866
    %2137 = vmatpush.bf16.msra.mxu0 %v1859
    %2138 = vmatpush.bf16.msra.mxu0 %v1852
    %2139 = vmatpush.bf16.msra.mxu0 %v1845
    %2140 = vmatpush.bf16.msra.mxu0 %v1838
    %2141 = vmatpush.bf16.msra.mxu0 %v1831
    %2142 = vmatpush.bf16.msra.mxu0 %v1824
    %2143 = vmatpush.bf16.msra.mxu0 %v1817
    %2144 = vmatmul.bf16.gmra.mxu0 %v672
    %v2145 = vpop.f32.mrf.mxu0
    %v2146 = vadd.f32 %v2133, %v2145
    %v2147 = vpop.f32.mrf.mxu0
    %2148 = vdwg.mxu0
    %2149 = vmatpush.bf16.msra.mxu0 %v1699
    %2150 = vmatpush.bf16.msra.mxu0 %v1692
    %2151 = vmatpush.bf16.msra.mxu0 %v1685
    %2152 = vmatpush.bf16.msra.mxu0 %v1678
    %2153 = vmatpush.bf16.msra.mxu0 %v1671
    %2154 = vmatpush.bf16.msra.mxu0 %v1664
    %2155 = vmatpush.bf16.msra.mxu0 %v1657
    %2156 = vmatpush.bf16.msra.mxu0 %v1650
    %2157 = vmatmul.bf16.gmra.mxu0 %v669
    %v2158 = vpop.f32.mrf.mxu0
    %v2159 = vadd.f32 %v932, %v2158
    %v2160 = vpop.f32.mrf.mxu0
    %2161 = vdwg.mxu0
    %2162 = vmatpush.bf16.msra.mxu0 %v1755
    %2163 = vmatpush.bf16.msra.mxu0 %v1748
    %2164 = vmatpush.bf16.msra.mxu0 %v1741
    %2165 = vmatpush.bf16.msra.mxu0 %v1734
    %2166 = vmatpush.bf16.msra.mxu0 %v1727
    %2167 = vmatpush.bf16.msra.mxu0 %v1720
    %2168 = vmatpush.bf16.msra.mxu0 %v1713
    %2169 = vmatpush.bf16.msra.mxu0 %v1706
    %2170 = vmatmul.bf16.gmra.mxu0 %v670
    %v2171 = vpop.f32.mrf.mxu0
    %v2172 = vadd.f32 %v2159, %v2171
    %v2173 = vpop.f32.mrf.mxu0
    %2174 = vdwg.mxu0
    %2175 = vmatpush.bf16.msra.mxu0 %v1811
    %2176 = vmatpush.bf16.msra.mxu0 %v1804
    %2177 = vmatpush.bf16.msra.mxu0 %v1797
    %2178 = vmatpush.bf16.msra.mxu0 %v1790
    %2179 = vmatpush.bf16.msra.mxu0 %v1783
    %2180 = vmatpush.bf16.msra.mxu0 %v1776
    %2181 = vmatpush.bf16.msra.mxu0 %v1769
    %2182 = vmatpush.bf16.msra.mxu0 %v1762
    %2183 = vmatmul.bf16.gmra.mxu0 %v671
    %v2184 = vpop.f32.mrf.mxu0
    %v2185 = vadd.f32 %v2172, %v2184
    %v2186 = vpop.f32.mrf.mxu0
    %2187 = vdwg.mxu0
    %2188 = vmatpush.bf16.msra.mxu0 %v1867
    %2189 = vmatpush.bf16.msra.mxu0 %v1860
    %2190 = vmatpush.bf16.msra.mxu0 %v1853
    %2191 = vmatpush.bf16.msra.mxu0 %v1846
    %2192 = vmatpush.bf16.msra.mxu0 %v1839
    %2193 = vmatpush.bf16.msra.mxu0 %v1832
    %2194 = vmatpush.bf16.msra.mxu0 %v1825
    %2195 = vmatpush.bf16.msra.mxu0 %v1818
    %2196 = vmatmul.bf16.gmra.mxu0 %v672
    %v2197 = vpop.f32.mrf.mxu0
    %v2198 = vadd.f32 %v2185, %v2197
    %v2199 = vpop.f32.mrf.mxu0
    %2200 = vdwg.mxu0
    %2201 = vmatpush.bf16.msra.mxu0 %v1700
    %2202 = vmatpush.bf16.msra.mxu0 %v1693
    %2203 = vmatpush.bf16.msra.mxu0 %v1686
    %2204 = vmatpush.bf16.msra.mxu0 %v1679
    %2205 = vmatpush.bf16.msra.mxu0 %v1672
    %2206 = vmatpush.bf16.msra.mxu0 %v1665
    %2207 = vmatpush.bf16.msra.mxu0 %v1658
    %2208 = vmatpush.bf16.msra.mxu0 %v1651
    %2209 = vmatmul.bf16.gmra.mxu0 %v669
    %v2210 = vpop.f32.mrf.mxu0
    %v2211 = vadd.f32 %v933, %v2210
    %v2212 = vpop.f32.mrf.mxu0
    %2213 = vdwg.mxu0
    %2214 = vmatpush.bf16.msra.mxu0 %v1756
    %2215 = vmatpush.bf16.msra.mxu0 %v1749
    %2216 = vmatpush.bf16.msra.mxu0 %v1742
    %2217 = vmatpush.bf16.msra.mxu0 %v1735
    %2218 = vmatpush.bf16.msra.mxu0 %v1728
    %2219 = vmatpush.bf16.msra.mxu0 %v1721
    %2220 = vmatpush.bf16.msra.mxu0 %v1714
    %2221 = vmatpush.bf16.msra.mxu0 %v1707
    %2222 = vmatmul.bf16.gmra.mxu0 %v670
    %v2223 = vpop.f32.mrf.mxu0
    %v2224 = vadd.f32 %v2211, %v2223
    %v2225 = vpop.f32.mrf.mxu0
    %2226 = vdwg.mxu0
    %2227 = vmatpush.bf16.msra.mxu0 %v1812
    %2228 = vmatpush.bf16.msra.mxu0 %v1805
    %2229 = vmatpush.bf16.msra.mxu0 %v1798
    %2230 = vmatpush.bf16.msra.mxu0 %v1791
    %2231 = vmatpush.bf16.msra.mxu0 %v1784
    %2232 = vmatpush.bf16.msra.mxu0 %v1777
    %2233 = vmatpush.bf16.msra.mxu0 %v1770
    %2234 = vmatpush.bf16.msra.mxu0 %v1763
    %2235 = vmatmul.bf16.gmra.mxu0 %v671
    %v2236 = vpop.f32.mrf.mxu0
    %v2237 = vadd.f32 %v2224, %v2236
    %v2238 = vpop.f32.mrf.mxu0
    %2239 = vdwg.mxu0
    %2240 = vmatpush.bf16.msra.mxu0 %v1868
    %2241 = vmatpush.bf16.msra.mxu0 %v1861
    %2242 = vmatpush.bf16.msra.mxu0 %v1854
    %2243 = vmatpush.bf16.msra.mxu0 %v1847
    %2244 = vmatpush.bf16.msra.mxu0 %v1840
    %2245 = vmatpush.bf16.msra.mxu0 %v1833
    %2246 = vmatpush.bf16.msra.mxu0 %v1826
    %2247 = vmatpush.bf16.msra.mxu0 %v1819
    %2248 = vmatmul.bf16.gmra.mxu0 %v672
    %v2249 = vpop.f32.mrf.mxu0
    %v2250 = vadd.f32 %v2237, %v2249
    %v2251 = vpop.f32.mrf.mxu0
    %2252 = vdwg.mxu0
    %2253 = vmatpush.bf16.msra.mxu0 %v1701
    %2254 = vmatpush.bf16.msra.mxu0 %v1694
    %2255 = vmatpush.bf16.msra.mxu0 %v1687
    %2256 = vmatpush.bf16.msra.mxu0 %v1680
    %2257 = vmatpush.bf16.msra.mxu0 %v1673
    %2258 = vmatpush.bf16.msra.mxu0 %v1666
    %2259 = vmatpush.bf16.msra.mxu0 %v1659
    %2260 = vmatpush.bf16.msra.mxu0 %v1652
    %2261 = vmatmul.bf16.gmra.mxu0 %v669
    %v2262 = vpop.f32.mrf.mxu0
    %v2263 = vadd.f32 %v934, %v2262
    %v2264 = vpop.f32.mrf.mxu0
    %2265 = vdwg.mxu0
    %2266 = vmatpush.bf16.msra.mxu0 %v1757
    %2267 = vmatpush.bf16.msra.mxu0 %v1750
    %2268 = vmatpush.bf16.msra.mxu0 %v1743
    %2269 = vmatpush.bf16.msra.mxu0 %v1736
    %2270 = vmatpush.bf16.msra.mxu0 %v1729
    %2271 = vmatpush.bf16.msra.mxu0 %v1722
    %2272 = vmatpush.bf16.msra.mxu0 %v1715
    %2273 = vmatpush.bf16.msra.mxu0 %v1708
    %2274 = vmatmul.bf16.gmra.mxu0 %v670
    %v2275 = vpop.f32.mrf.mxu0
    %v2276 = vadd.f32 %v2263, %v2275
    %v2277 = vpop.f32.mrf.mxu0
    %2278 = vdwg.mxu0
    %2279 = vmatpush.bf16.msra.mxu0 %v1813
    %2280 = vmatpush.bf16.msra.mxu0 %v1806
    %2281 = vmatpush.bf16.msra.mxu0 %v1799
    %2282 = vmatpush.bf16.msra.mxu0 %v1792
    %2283 = vmatpush.bf16.msra.mxu0 %v1785
    %2284 = vmatpush.bf16.msra.mxu0 %v1778
    %2285 = vmatpush.bf16.msra.mxu0 %v1771
    %2286 = vmatpush.bf16.msra.mxu0 %v1764
    %2287 = vmatmul.bf16.gmra.mxu0 %v671
    %v2288 = vpop.f32.mrf.mxu0
    %v2289 = vadd.f32 %v2276, %v2288
    %v2290 = vpop.f32.mrf.mxu0
    %2291 = vdwg.mxu0
    %2292 = vmatpush.bf16.msra.mxu0 %v1869
    %2293 = vmatpush.bf16.msra.mxu0 %v1862
    %2294 = vmatpush.bf16.msra.mxu0 %v1855
    %2295 = vmatpush.bf16.msra.mxu0 %v1848
    %2296 = vmatpush.bf16.msra.mxu0 %v1841
    %2297 = vmatpush.bf16.msra.mxu0 %v1834
    %2298 = vmatpush.bf16.msra.mxu0 %v1827
    %2299 = vmatpush.bf16.msra.mxu0 %v1820
    %2300 = vmatmul.bf16.gmra.mxu0 %v672
    %v2301 = vpop.f32.mrf.mxu0
    %v2302 = vadd.f32 %v2289, %v2301
    %v2303 = vpop.f32.mrf.mxu0
    %2304 = vdwg.mxu0
    %2305 = vmatpush.bf16.msra.mxu0 %v1702
    %2306 = vmatpush.bf16.msra.mxu0 %v1695
    %2307 = vmatpush.bf16.msra.mxu0 %v1688
    %2308 = vmatpush.bf16.msra.mxu0 %v1681
    %2309 = vmatpush.bf16.msra.mxu0 %v1674
    %2310 = vmatpush.bf16.msra.mxu0 %v1667
    %2311 = vmatpush.bf16.msra.mxu0 %v1660
    %2312 = vmatpush.bf16.msra.mxu0 %v1653
    %2313 = vmatmul.bf16.gmra.mxu0 %v669
    %v2314 = vpop.f32.mrf.mxu0
    %v2315 = vadd.f32 %v935, %v2314
    %v2316 = vpop.f32.mrf.mxu0
    %2317 = vdwg.mxu0
    %2318 = vmatpush.bf16.msra.mxu0 %v1758
    %2319 = vmatpush.bf16.msra.mxu0 %v1751
    %2320 = vmatpush.bf16.msra.mxu0 %v1744
    %2321 = vmatpush.bf16.msra.mxu0 %v1737
    %2322 = vmatpush.bf16.msra.mxu0 %v1730
    %2323 = vmatpush.bf16.msra.mxu0 %v1723
    %2324 = vmatpush.bf16.msra.mxu0 %v1716
    %2325 = vmatpush.bf16.msra.mxu0 %v1709
    %2326 = vmatmul.bf16.gmra.mxu0 %v670
    %v2327 = vpop.f32.mrf.mxu0
    %v2328 = vadd.f32 %v2315, %v2327
    %v2329 = vpop.f32.mrf.mxu0
    %2330 = vdwg.mxu0
    %2331 = vmatpush.bf16.msra.mxu0 %v1814
    %2332 = vmatpush.bf16.msra.mxu0 %v1807
    %2333 = vmatpush.bf16.msra.mxu0 %v1800
    %2334 = vmatpush.bf16.msra.mxu0 %v1793
    %2335 = vmatpush.bf16.msra.mxu0 %v1786
    %2336 = vmatpush.bf16.msra.mxu0 %v1779
    %2337 = vmatpush.bf16.msra.mxu0 %v1772
    %2338 = vmatpush.bf16.msra.mxu0 %v1765
    %2339 = vmatmul.bf16.gmra.mxu0 %v671
    %v2340 = vpop.f32.mrf.mxu0
    %v2341 = vadd.f32 %v2328, %v2340
    %v2342 = vpop.f32.mrf.mxu0
    %2343 = vdwg.mxu0
    %2344 = vmatpush.bf16.msra.mxu0 %v1870
    %2345 = vmatpush.bf16.msra.mxu0 %v1863
    %2346 = vmatpush.bf16.msra.mxu0 %v1856
    %2347 = vmatpush.bf16.msra.mxu0 %v1849
    %2348 = vmatpush.bf16.msra.mxu0 %v1842
    %2349 = vmatpush.bf16.msra.mxu0 %v1835
    %2350 = vmatpush.bf16.msra.mxu0 %v1828
    %2351 = vmatpush.bf16.msra.mxu0 %v1821
    %2352 = vmatmul.bf16.gmra.mxu0 %v672
    %v2353 = vpop.f32.mrf.mxu0
    %v2354 = vadd.f32 %v2341, %v2353
    %v2355 = vpop.f32.mrf.mxu0
    %2356 = vdwg.mxu0
    %2357 = vmatpush.bf16.msra.mxu0 %v1703
    %2358 = vmatpush.bf16.msra.mxu0 %v1696
    %2359 = vmatpush.bf16.msra.mxu0 %v1689
    %2360 = vmatpush.bf16.msra.mxu0 %v1682
    %2361 = vmatpush.bf16.msra.mxu0 %v1675
    %2362 = vmatpush.bf16.msra.mxu0 %v1668
    %2363 = vmatpush.bf16.msra.mxu0 %v1661
    %2364 = vmatpush.bf16.msra.mxu0 %v1654
    %2365 = vmatmul.bf16.gmra.mxu0 %v669
    %v2366 = vpop.f32.mrf.mxu0
    %v2367 = vadd.f32 %v936, %v2366
    %v2368 = vpop.f32.mrf.mxu0
    %2369 = vdwg.mxu0
    %2370 = vmatpush.bf16.msra.mxu0 %v1759
    %2371 = vmatpush.bf16.msra.mxu0 %v1752
    %2372 = vmatpush.bf16.msra.mxu0 %v1745
    %2373 = vmatpush.bf16.msra.mxu0 %v1738
    %2374 = vmatpush.bf16.msra.mxu0 %v1731
    %2375 = vmatpush.bf16.msra.mxu0 %v1724
    %2376 = vmatpush.bf16.msra.mxu0 %v1717
    %2377 = vmatpush.bf16.msra.mxu0 %v1710
    %2378 = vmatmul.bf16.gmra.mxu0 %v670
    %v2379 = vpop.f32.mrf.mxu0
    %v2380 = vadd.f32 %v2367, %v2379
    %v2381 = vpop.f32.mrf.mxu0
    %2382 = vdwg.mxu0
    %2383 = vmatpush.bf16.msra.mxu0 %v1815
    %2384 = vmatpush.bf16.msra.mxu0 %v1808
    %2385 = vmatpush.bf16.msra.mxu0 %v1801
    %2386 = vmatpush.bf16.msra.mxu0 %v1794
    %2387 = vmatpush.bf16.msra.mxu0 %v1787
    %2388 = vmatpush.bf16.msra.mxu0 %v1780
    %2389 = vmatpush.bf16.msra.mxu0 %v1773
    %2390 = vmatpush.bf16.msra.mxu0 %v1766
    %2391 = vmatmul.bf16.gmra.mxu0 %v671
    %v2392 = vpop.f32.mrf.mxu0
    %v2393 = vadd.f32 %v2380, %v2392
    %v2394 = vpop.f32.mrf.mxu0
    %2395 = vdwg.mxu0
    %2396 = vmatpush.bf16.msra.mxu0 %v1871
    %2397 = vmatpush.bf16.msra.mxu0 %v1864
    %2398 = vmatpush.bf16.msra.mxu0 %v1857
    %2399 = vmatpush.bf16.msra.mxu0 %v1850
    %2400 = vmatpush.bf16.msra.mxu0 %v1843
    %2401 = vmatpush.bf16.msra.mxu0 %v1836
    %2402 = vmatpush.bf16.msra.mxu0 %v1829
    %2403 = vmatpush.bf16.msra.mxu0 %v1822
    %2404 = vmatmul.bf16.gmra.mxu0 %v672
    %v2405 = vpop.f32.mrf.mxu0
    %v2406 = vadd.f32 %v2393, %v2405
    %v2407 = vpop.f32.mrf.mxu0
    %2408 = vdwg.mxu0
    %2409 = vmatpush.bf16.msra.mxu0 %v1704
    %2410 = vmatpush.bf16.msra.mxu0 %v1697
    %2411 = vmatpush.bf16.msra.mxu0 %v1690
    %2412 = vmatpush.bf16.msra.mxu0 %v1683
    %2413 = vmatpush.bf16.msra.mxu0 %v1676
    %2414 = vmatpush.bf16.msra.mxu0 %v1669
    %2415 = vmatpush.bf16.msra.mxu0 %v1662
    %2416 = vmatpush.bf16.msra.mxu0 %v1655
    %2417 = vmatmul.bf16.gmra.mxu0 %v669
    %v2418 = vpop.f32.mrf.mxu0
    %v2419 = vadd.f32 %v937, %v2418
    %v2420 = vpop.f32.mrf.mxu0
    %2421 = vdwg.mxu0
    %2422 = vmatpush.bf16.msra.mxu0 %v1760
    %2423 = vmatpush.bf16.msra.mxu0 %v1753
    %2424 = vmatpush.bf16.msra.mxu0 %v1746
    %2425 = vmatpush.bf16.msra.mxu0 %v1739
    %2426 = vmatpush.bf16.msra.mxu0 %v1732
    %2427 = vmatpush.bf16.msra.mxu0 %v1725
    %2428 = vmatpush.bf16.msra.mxu0 %v1718
    %2429 = vmatpush.bf16.msra.mxu0 %v1711
    %2430 = vmatmul.bf16.gmra.mxu0 %v670
    %v2431 = vpop.f32.mrf.mxu0
    %v2432 = vadd.f32 %v2419, %v2431
    %v2433 = vpop.f32.mrf.mxu0
    %2434 = vdwg.mxu0
    %2435 = vmatpush.bf16.msra.mxu0 %v1816
    %2436 = vmatpush.bf16.msra.mxu0 %v1809
    %2437 = vmatpush.bf16.msra.mxu0 %v1802
    %2438 = vmatpush.bf16.msra.mxu0 %v1795
    %2439 = vmatpush.bf16.msra.mxu0 %v1788
    %2440 = vmatpush.bf16.msra.mxu0 %v1781
    %2441 = vmatpush.bf16.msra.mxu0 %v1774
    %2442 = vmatpush.bf16.msra.mxu0 %v1767
    %2443 = vmatmul.bf16.gmra.mxu0 %v671
    %v2444 = vpop.f32.mrf.mxu0
    %v2445 = vadd.f32 %v2432, %v2444
    %v2446 = vpop.f32.mrf.mxu0
    %2447 = vdwg.mxu0
    %2448 = vmatpush.bf16.msra.mxu0 %v1872
    %2449 = vmatpush.bf16.msra.mxu0 %v1865
    %2450 = vmatpush.bf16.msra.mxu0 %v1858
    %2451 = vmatpush.bf16.msra.mxu0 %v1851
    %2452 = vmatpush.bf16.msra.mxu0 %v1844
    %2453 = vmatpush.bf16.msra.mxu0 %v1837
    %2454 = vmatpush.bf16.msra.mxu0 %v1830
    %2455 = vmatpush.bf16.msra.mxu0 %v1823
    %2456 = vmatmul.bf16.gmra.mxu0 %v672
    %v2457 = vpop.f32.mrf.mxu0
    %v2458 = vadd.f32 %v2445, %v2457
    %v2459 = vpop.f32.mrf.mxu0
    %2460 = vdwg.mxu0
    %vm2461 = vcmp.ge.f32.partialorder %v2146, 0.0
    %vm2462 = vcmp.ge.f32.partialorder %v2198, 0.0
    %vm2463 = vcmp.ge.f32.partialorder %v2250, 0.0
    %vm2464 = vcmp.ge.f32.partialorder %v2302, 0.0
    %vm2465 = vcmp.ge.f32.partialorder %v2354, 0.0
    %vm2466 = vcmp.ge.f32.partialorder %v2406, 0.0
    %vm2467 = vcmp.ge.f32.partialorder %v2458, 0.0
    %v2468 = vmul.f32 %v2146, 0.3
    %v2469 = vmul.f32 %v2198, 0.3
    %v2470 = vmul.f32 %v2250, 0.3
    %v2471 = vmul.f32 %v2302, 0.3
    %v2472 = vmul.f32 %v2354, 0.3
    %v2473 = vmul.f32 %v2406, 0.3
    %v2474 = vmul.f32 %v2458, 0.3
    %v2475 = vsel %vm2461, %v2146, %v2468
    %v2476 = vsel %vm2462, %v2198, %v2469
    %v2477 = vsel %vm2463, %v2250, %v2470
    %v2478 = vsel %vm2464, %v2302, %v2471
    %v2479 = vsel %vm2465, %v2354, %v2472
    %v2480 = vsel %vm2466, %v2406, %v2473
    %v2481 = vsel %vm2467, %v2458, %v2474
    %v2482 = vtanh.pop %v2475
    %v2483 = vtanh.pop %v2476
    %v2484 = vtanh.pop %v2477
    %v2485 = vtanh.pop %v2478
    %v2486 = vtanh.pop %v2479
    %v2487 = vtanh.pop %v2480
    %v2488 = vtanh.pop %v2481
    %2489 = vst [vmem:[#allocation2] sm:$0xff] %v2482
    %2490 = vst [vmem:[#allocation2 + $0x8] sm:$0xff] %v2483
    %2491 = vst [vmem:[#allocation2 + $0x10] sm:$0xff] %v2484
    %2492 = vst [vmem:[#allocation2 + $0x18] sm:$0xff] %v2485
    %2493 = vst [vmem:[#allocation2 + $0x20] sm:$0xff] %v2486
    %2494 = vst [vmem:[#allocation2 + $0x28] sm:$0xff] %v2487
    %vm2495 = vcmask 130048
    %2496 = vst.msk [vmem:[#allocation2 + $0x30] sm:$0xff] %vm2495, %v2488
    // Predicated region
    $region30: #{_generator_call.1} parent=1 // pred_check
      _
    $region31: #{_generator_call.1} parent=1 // pred_check_branch
      %2498 = sbr.rel (0) target = $region33
    $region32: #{_generator_call.1} parent=1 // pred_region
      %2500 = vsyncadd [#allocation3], 0
      %s2502 = sshll.u32 [#allocation2], 4
      %s2503 = int_to_ptr.vmem [resolvable:$true] %s2502
      %s2504 = sshll.u32 %s7, 4
      %s2505 = int_to_ptr.hbm [resolvable:$true] %s2504
      %2507 = dma.vmem_to_hbm [thread:$0]  %s2503, 896, %s2505, [#allocation3]
    $region33: #{_generator_call.1} parent=1 // pred_fallthru
      _
    // Predicated region
    $region34: #{_generator_call.1} parent=1 // pred_check
      _
    $region35: #{_generator_call.1} parent=1 // pred_check_branch
      %2509 = sbr.rel (0) target = $region37
    $region36: #{_generator_call.1} parent=1 // pred_region
      %2511 = dma.done [#allocation3], 896
    $region37: #{_generator_call.1} parent=1 // pred_fallthru
      _
    %2512 = vsyncpa [#allocation3], 1

</llo_original>
